<compile_context>
chip_gen: v7x
topology: tpu7x:2x2x1
jax: 0.10.0
libtpu: 0.0.40
codegen_flags: <defaults>
</compile_context>

<pallas_src>
import functools
import math

import jax
import jax.numpy as jnp
from jax.experimental import pallas as pl
from jax.experimental.pallas import tpu as pltpu


_BN_EPS = 1e-5


# ----------------------------------------------------------------------------
# Tiling helpers
# ----------------------------------------------------------------------------

def _round_up(x, m):
    return ((x + m - 1) // m) * m


def _k_pad(k):
    """Lane-aligned padded K: multiple of 128 (multiple of 512 beyond 512)."""
    kp = _round_up(max(k, 1), 128)
    if kp > 512:
        kp = _round_up(kp, 512)
    return kp


def _pick_tk(kp):
    for t in (512, 256, 128):
        if t <= kp and kp % t == 0:
            return t
    return kp


def _m_tiling(m):
    """(padded M, tile M).  TM capped at 256: M=512 splits into grid=(2,.) so
    the 'parallel' M axis can shard across both TensorCores on v7x; smaller M
    collapses to a single grid step."""
    mp = _round_up(max(m, 1), 16)
    if mp <= 256:
        return mp, mp
    return _round_up(m, 256), 256


# ----------------------------------------------------------------------------
# Pallas GEMM kernels (fused bias + ReLU epilogue)
# ----------------------------------------------------------------------------

def _gemm_bias_relu_kernel(a_ref, w_ref, b_ref, o_ref):
    """nk == 1 fast path: single dot straight to the output block."""
    y = jnp.dot(a_ref[...], w_ref[...], preferred_element_type=jnp.float32)
    o_ref[...] = jnp.maximum(y + b_ref[...], 0.0)


def _gemm_bias_relu_acc_kernel(a_ref, w_ref, b_ref, o_ref, *, nk):
    """General nk > 1 path: accumulate directly into the resident f32 output
    block (no scratch); bias + ReLU applied on the last k step only."""
    k = pl.program_id(2)

    @pl.when(k == 0)
    def _():
        o_ref[...] = jnp.zeros_like(o_ref)

    o_ref[...] += jnp.dot(a_ref[...], w_ref[...],
                          preferred_element_type=jnp.float32)

    @pl.when(k == nk - 1)
    def _():
        o_ref[...] = jnp.maximum(o_ref[...] + b_ref[...], 0.0)


@functools.lru_cache(maxsize=None)
def _get_gemm_fn(mp, kp, np_, tm, tk, tn):
    nk = kp // tk
    if nk == 1:
        return pl.pallas_call(
            _gemm_bias_relu_kernel,
            out_shape=jax.ShapeDtypeStruct((mp, np_), jnp.float32),
            grid_spec=pltpu.PrefetchScalarGridSpec(
                num_scalar_prefetch=0,
                grid=(mp // tm, np_ // tn),
                in_specs=[
                    pl.BlockSpec((tm, tk), lambda i, j: (i, 0)),
                    pl.BlockSpec((tk, tn), lambda i, j: (0, j)),
                    pl.BlockSpec((1, tn), lambda i, j: (0, j)),
                ],
                out_specs=pl.BlockSpec((tm, tn), lambda i, j: (i, j)),
            ),
            compiler_params=pltpu.CompilerParams(
                dimension_semantics=("parallel", "parallel")),
        )
    return pl.pallas_call(
        functools.partial(_gemm_bias_relu_acc_kernel, nk=nk),
        out_shape=jax.ShapeDtypeStruct((mp, np_), jnp.float32),
        grid_spec=pltpu.PrefetchScalarGridSpec(
            num_scalar_prefetch=0,
            grid=(mp // tm, np_ // tn, nk),
            in_specs=[
                pl.BlockSpec((tm, tk), lambda i, j, k: (i, k)),
                pl.BlockSpec((tk, tn), lambda i, j, k: (k, j)),
                pl.BlockSpec((1, tn), lambda i, j, k: (0, j)),
            ],
            out_specs=pl.BlockSpec((tm, tn), lambda i, j, k: (i, j)),
        ),
        compiler_params=pltpu.CompilerParams(
            dimension_semantics=("parallel", "parallel", "arbitrary")),
    )


def pallas_gemm_bias_relu(a, w_pad, bias_pad):
    """relu(a @ w + bias).  a: (M, K) f32; w_pad: (Kp, Np) bf16 (pre-padded,
    pre-packed); bias_pad: (1, Np) f32.  Returns the lane-dense (M, Np) f32
    output slab (padded channel columns are kept; callers slice at the end)."""
    m, k = a.shape
    kp, np_ = w_pad.shape
    mp, tm = _m_tiling(m)
    tk = _pick_tk(kp)
    tn = min(np_, 512)
    a_p = jnp.pad(a, ((0, mp - m), (0, kp - k))).astype(jnp.bfloat16)
    out = _get_gemm_fn(mp, kp, np_, tm, tk, tn)(a_p, w_pad, bias_pad)
    return out[:m]


# ----------------------------------------------------------------------------
# NHWC glue (maxpool / im2col) — memory-bound, fuses under the outer jax.jit
# ----------------------------------------------------------------------------

def _maxpool3x3_same_nhwc(x):
    """MaxPool2d(kernel=3, stride=1, padding=1), channel-last."""
    n, h, w, c = x.shape
    xp = jnp.pad(x, ((0, 0), (1, 1), (1, 1), (0, 0)),
                 constant_values=-jnp.inf)
    out = xp[:, 0:h, 0:w, :]
    for i in range(3):
        for j in range(3):
            if i == 0 and j == 0:
                continue
            out = jnp.maximum(out, xp[:, i:i + h, j:j + w, :])
    return out


def _im2col_nhwc(x, kh, kw, pad):
    """x: (B, H, W, C) -> (B*H*W, C*kh*kw).  K ordering is C-major, tap-minor
    (index = c*kh*kw + i*kw + j), matching the OIHW weight reshape."""
    n, h, w, c = x.shape
    if kh == 1 and kw == 1 and pad == 0:
        return x.reshape(n * h * w, c)
    xp = jnp.pad(x, ((0, 0), (pad, pad), (pad, pad), (0, 0)))
    cols = [xp[:, i:i + h, j:j + w, :] for i in range(kh) for j in range(kw)]
    patches = jnp.stack(cols, axis=-1)            # (n, h, w, c, kh*kw)
    return patches.reshape(n * h * w, c * kh * kw)


# ----------------------------------------------------------------------------
# Parameter construction: BN folded into conv, weights packed into two slabs
# ----------------------------------------------------------------------------

def _make_conv_bn_params(key, cin, cout, k):
    k_w, k_g, k_b, k_m, k_v = jax.random.split(key, 5)
    w = (jax.random.normal(k_w, (cout, cin, k, k), jnp.float32)
         / math.sqrt(cin * k * k))
    gamma = 1.0 + 0.1 * jax.random.normal(k_g, (cout,), jnp.float32)
    beta = 0.1 * jax.random.normal(k_b, (cout,), jnp.float32)
    mean = 0.1 * jax.random.normal(k_m, (cout,), jnp.float32)
    var = 1.0 + 0.1 * jax.random.uniform(k_v, (cout,), jnp.float32)
    # Fold eval-mode BatchNorm into the bias-free conv.
    scale = gamma / jnp.sqrt(var + _BN_EPS)
    w_fold = w * scale[:, None, None, None]
    b_fold = beta - mean * scale
    return dict(w_raw=w, gamma=gamma, beta=beta, mean=mean, var=var,
                w_fold=w_fold, b_fold=b_fold, cin=cin, cout=cout, k=k)


def make_inception_params(key, cin, out_1x1, red_3x3, out_3x3, red_5x5,
                          out_5x5, out_1x1pool):
    ks = jax.random.split(key, 6)
    blocks = dict(
        b1=_make_conv_bn_params(ks[0], cin, out_1x1, 1),
        b2_red=_make_conv_bn_params(ks[1], cin, red_3x3, 1),
        b2_out=_make_conv_bn_params(ks[2], red_3x3, out_3x3, 3),
        b3_red=_make_conv_bn_params(ks[3], cin, red_5x5, 1),
        b3_out=_make_conv_bn_params(ks[4], red_5x5, out_5x5, 5),
        b4=_make_conv_bn_params(ks[5], cin, out_1x1pool, 1),
    )

    # ---- Stage-1 slab: all four 1x1 convs in ONE GEMM. ------------------
    # K rows [0:cin) read the x channels, rows [cin:2*cin) read maxpool(x)
    # (branch4).  N columns: [b1 | b2_red | b3_red | b4].
    kp1 = _k_pad(2 * cin)
    n1 = out_1x1 + red_3x3 + red_5x5 + out_1x1pool
    np1 = _round_up(n1, 128)
    w1 = jnp.zeros((kp1, np1), jnp.float32)
    bias1 = jnp.zeros((1, np1), jnp.float32)
    col = 0
    cols1 = {}
    for name, krow in (("b1", 0), ("b2_red", 0), ("b3_red", 0), ("b4", cin)):
        p = blocks[name]
        co = p["cout"]
        wm = p["w_fold"].reshape(co, cin).T                     # (cin, cout)
        w1 = w1.at[krow:krow + cin, col:col + co].set(wm)
        bias1 = bias1.at[0, col:col + co].set(p["b_fold"])
        cols1[name] = (col, col + co)
        col += co

    # ---- Stage-2 slab: the 3x3 and 5x5 convs in ONE GEMM. ---------------
    # K is two lane-aligned groups of width kg: group 0 = 3x3 im2col
    # features, group 1 = 5x5 im2col features (block-diagonal weights).
    k3 = red_3x3 * 9
    k5 = red_5x5 * 25
    kg = _k_pad(max(k3, k5))
    kp2 = 2 * kg
    n2 = out_3x3 + out_5x5
    np2 = _round_up(n2, 128)
    w2 = jnp.zeros((kp2, np2), jnp.float32)
    bias2 = jnp.zeros((1, np2), jnp.float32)
    p3 = blocks["b2_out"]
    w2 = w2.at[0:k3, 0:out_3x3].set(p3["w_fold"].reshape(out_3x3, k3).T)
    bias2 = bias2.at[0, 0:out_3x3].set(p3["b_fold"])
    p5 = blocks["b3_out"]
    w2 = w2.at[kg:kg + k5, out_3x3:out_3x3 + out_5x5].set(
        p5["w_fold"].reshape(out_5x5, k5).T)
    bias2 = bias2.at[0, out_3x3:out_3x3 + out_5x5].set(p5["b_fold"])
    cols2 = {"b2": (0, out_3x3), "b3": (out_3x3, out_3x3 + out_5x5)}

    return dict(
        blocks=blocks,                      # raw params for the reference
        w1=w1.astype(jnp.bfloat16), bias1=bias1,
        w2=w2.astype(jnp.bfloat16), bias2=bias2,
        meta=dict(cin=cin, kg=kg, k3=k3, k5=k5, cols1=cols1, cols2=cols2),
    )


# ----------------------------------------------------------------------------
# Forward pass (NHWC / lane-dense between the two Pallas GEMMs)
# ----------------------------------------------------------------------------

def inception_forward(params, x):
    meta = params["meta"]
    n, cin, h, w = x.shape
    m = n * h * w

    xh = jnp.transpose(x, (0, 2, 3, 1))               # NHWC
    pooled = _maxpool3x3_same_nhwc(xh)

    # Stage 1: all four 1x1 Conv+BN+ReLU in one Pallas GEMM.
    a1 = jnp.concatenate([xh, pooled], axis=-1).reshape(m, 2 * cin)
    y1 = pallas_gemm_bias_relu(a1, params["w1"], params["bias1"])  # (m, 128)

    # Stage 2: 3x3 and 5x5 Conv+BN+ReLU in one Pallas GEMM.
    c1 = meta["cols1"]
    y1n = y1.reshape(n, h, w, -1)
    r3 = y1n[..., c1["b2_red"][0]:c1["b2_red"][1]]
    r5 = y1n[..., c1["b3_red"][0]:c1["b3_red"][1]]
    p3 = _im2col_nhwc(r3, 3, 3, 1)
    p5 = _im2col_nhwc(r5, 5, 5, 2)
    kg = meta["kg"]
    a2 = jnp.concatenate(
        [jnp.pad(p3, ((0, 0), (0, kg - meta["k3"]))),
         jnp.pad(p5, ((0, 0), (0, kg - meta["k5"])))], axis=-1)
    y2 = pallas_gemm_bias_relu(a2, params["w2"], params["bias2"])  # (m, 128)

    # Branch concat on the channel (last) axis, then one transpose to NCHW.
    c2 = meta["cols2"]
    out = jnp.concatenate(
        [y1[:, c1["b1"][0]:c1["b1"][1]],
         y2[:, c2["b2"][0]:c2["b2"][1]],
         y2[:, c2["b3"][0]:c2["b3"][1]],
         y1[:, c1["b4"][0]:c1["b4"][1]]], axis=-1)
    return out.reshape(n, h, w, -1).transpose(0, 3, 1, 2)


# ----------------------------------------------------------------------------
# Pure-JAX reference (un-folded BN, f32 convs, NCHW) for the sanity check
# ----------------------------------------------------------------------------

def _ref_conv_block(x, p):
    pad = p["k"] // 2
    y = jax.lax.conv_general_dilated(
        x, p["w_raw"], window_strides=(1, 1),
        padding=((pad, pad), (pad, pad)),
        dimension_numbers=("NCHW", "OIHW", "NCHW"),
        precision=jax.lax.Precision.HIGHEST)
    sh = (1, -1, 1, 1)
    y = (y - p["mean"].reshape(sh)) / jnp.sqrt(p["var"].reshape(sh) + _BN_EPS)
    y = y * p["gamma"].reshape(sh) + p["beta"].reshape(sh)
    return jnp.maximum(y, 0.0)


def _ref_maxpool_nchw(x):
    n, c, h, w = x.shape
    xp = jnp.pad(x, ((0, 0), (0, 0), (1, 1), (1, 1)),
                 constant_values=-jnp.inf)
    out = xp[:, :, 0:h, 0:w]
    for i in range(3):
        for j in range(3):
            if i == 0 and j == 0:
                continue
            out = jnp.maximum(out, xp[:, :, i:i + h, j:j + w])
    return out


def inception_reference(params, x):
    b = params["blocks"]
    b1 = _ref_conv_block(x, b["b1"])
    b2 = _ref_conv_block(_ref_conv_block(x, b["b2_red"]), b["b2_out"])
    b3 = _ref_conv_block(_ref_conv_block(x, b["b3_red"]), b["b3_out"])
    b4 = _ref_conv_block(_ref_maxpool_nchw(x), b["b4"])
    return jnp.concatenate([b1, b2, b3, b4], axis=1)


# ----------------------------------------------------------------------------
# Main
# ----------------------------------------------------------------------------

if __name__ == "__main__":
    # Small configuration consistent with the module's constructor.
    B, CIN, H, W = 2, 4, 16, 16
    OUT_1X1, RED_3X3, OUT_3X3 = 8, 4, 8
    RED_5X5, OUT_5X5, OUT_POOL = 4, 8, 8

    pkey, xkey = jax.random.split(jax.random.PRNGKey(0))
    params = make_inception_params(pkey, CIN, OUT_1X1, RED_3X3, OUT_3X3,
                                   RED_5X5, OUT_5X5, OUT_POOL)
    x = jax.random.normal(xkey, (B, CIN, H, W), jnp.float32)

    # Close over params so the packed slabs are constants, slice offsets stay
    # Python ints, and the whole forward (maxpool / im2col glue + the two
    # Pallas GEMMs) compiles as ONE jit program.
    fwd = jax.jit(functools.partial(inception_forward, params))
    out = jax.block_until_ready(fwd(x))

    expect_c = OUT_1X1 + OUT_3X3 + OUT_5X5 + OUT_POOL
    assert out.shape == (B, expect_c, H, W), out.shape
    assert bool(jnp.all(jnp.isfinite(out)))

    # Correctness check against a pure-JAX f32 reference (the Pallas path
    # feeds the MXU bf16 operands -> loose tolerance).
    ref = jax.block_until_ready(inception_reference(params, x))
    max_err = float(jnp.max(jnp.abs(out - ref)))
    assert max_err < 1e-1, f"max abs err {max_err}"

    print("KERNEL_OK")
</pallas_src>

<mosaic_0001>
module attributes {stable_mosaic.version = 11 : i64} {
  func.func @_gemm_bias_relu_kernel(%arg0: i32, %arg1: i32, %arg2: memref<256x128xbf16, #tpu.memory_space<vmem>>, %arg3: memref<128x128xbf16, #tpu.memory_space<vmem>>, %arg4: memref<1x128xf32, #tpu.memory_space<vmem>>, %arg5: memref<256x128xf32, #tpu.memory_space<vmem>>) attributes {dimension_semantics = [#tpu.dimension_semantics<parallel>, #tpu.dimension_semantics<parallel>], iteration_bounds = array<i64: 2, 1>, scalar_prefetch = 0 : i64, scratch_operands = 0 : i64, tpu.core_type = #tpu.core_type<tc>, window_params = [{transform_indices = @transform_0, window_bounds = array<i64: 256, 128>}, {transform_indices = @transform_1, window_bounds = array<i64: 128, 128>}, {transform_indices = @transform_2, window_bounds = array<i64: 1, 128>}, {transform_indices = @transform_3, window_bounds = array<i64: 256, 128>}]} {
    %c0 = arith.constant 0 : index
    %c0_0 = arith.constant 0 : index
    %0 = vector.load %arg2[%c0, %c0_0] : memref<256x128xbf16, #tpu.memory_space<vmem>>, vector<256x128xbf16>
    %c0_1 = arith.constant 0 : index
    %c0_2 = arith.constant 0 : index
    %1 = vector.load %arg3[%c0_1, %c0_2] : memref<128x128xbf16, #tpu.memory_space<vmem>>, vector<128x128xbf16>
    %cst = arith.constant dense<0.000000e+00> : vector<256x128xf32>
    %2 = tpu.matmul %0, %1, %cst {dimension_numbers = #tpu.dot_dimension_numbers<[1], [0], [0], [1], [0, 0, 1, 1], [], []>} : vector<256x128xbf16>, vector<128x128xbf16>, vector<256x128xf32> -> vector<256x128xf32>
    %c0_3 = arith.constant 0 : index
    %c0_4 = arith.constant 0 : index
    %3 = vector.load %arg4[%c0_3, %c0_4] : memref<1x128xf32, #tpu.memory_space<vmem>>, vector<1x128xf32>
    %4 = vector.broadcast %3 : vector<1x128xf32> to vector<256x128xf32>
    %5 = arith.addf %2, %4 : vector<256x128xf32>
    %cst_5 = arith.constant 0.000000e+00 : f32
    %6 = vector.broadcast %cst_5 : f32 to vector<256x128xf32>
    %7 = arith.maximumf %5, %6 : vector<256x128xf32>
    %c0_6 = arith.constant 0 : index
    %c0_7 = arith.constant 0 : index
    %8 = vector.load %arg5[%c0_6, %c0_7] : memref<256x128xf32, #tpu.memory_space<vmem>>, vector<256x128xf32>
    tpu.vector_store %arg5[%c0_6, %c0_7], %7 {strides = array<i32>} : memref<256x128xf32, #tpu.memory_space<vmem>>, vector<256x128xf32>,
    return
  }
  func.func @transform_0(%arg0: i32, %arg1: i32) -> (i32, i32) {
    %c0_i32 = arith.constant 0 : i32
    %c0_i32_0 = arith.constant 0 : i32
    return %arg0, %c0_i32 : i32, i32
  }
  func.func @transform_1(%arg0: i32, %arg1: i32) -> (i32, i32) {
    %c0_i32 = arith.constant 0 : i32
    %c0_i32_0 = arith.constant 0 : i32
    return %c0_i32, %arg1 : i32, i32
  }
  func.func @transform_2(%arg0: i32, %arg1: i32) -> (i32, i32) {
    %c0_i32 = arith.constant 0 : i32
    %c0_i32_0 = arith.constant 0 : i32
    return %c0_i32, %arg1 : i32, i32
  }
  func.func @transform_3(%arg0: i32, %arg1: i32) -> (i32, i32) {
    %c0_i32 = arith.constant 0 : i32
    return %arg0, %arg1 : i32, i32
  }
}

module attributes {stable_mosaic.version = 11 : i64} {
  func.func @_gemm_bias_relu_kernel(%arg0: i32, %arg1: i32, %arg2: memref<256x256xbf16, #tpu.memory_space<vmem>>, %arg3: memref<256x128xbf16, #tpu.memory_space<vmem>>, %arg4: memref<1x128xf32, #tpu.memory_space<vmem>>, %arg5: memref<256x128xf32, #tpu.memory_space<vmem>>) attributes {dimension_semantics = [#tpu.dimension_semantics<parallel>, #tpu.dimension_semantics<parallel>], iteration_bounds = array<i64: 2, 1>, scalar_prefetch = 0 : i64, scratch_operands = 0 : i64, tpu.core_type = #tpu.core_type<tc>, window_params = [{transform_indices = @transform_0, window_bounds = array<i64: 256, 256>}, {transform_indices = @transform_1, window_bounds = array<i64: 256, 128>}, {transform_indices = @transform_2, window_bounds = array<i64: 1, 128>}, {transform_indices = @transform_3, window_bounds = array<i64: 256, 128>}]} {
    %c0 = arith.constant 0 : index
    %c0_0 = arith.constant 0 : index
    %0 = vector.load %arg2[%c0, %c0_0] : memref<256x256xbf16, #tpu.memory_space<vmem>>, vector<256x256xbf16>
    %c0_1 = arith.constant 0 : index
    %c0_2 = arith.constant 0 : index
    %1 = vector.load %arg3[%c0_1, %c0_2] : memref<256x128xbf16, #tpu.memory_space<vmem>>, vector<256x128xbf16>
    %cst = arith.constant dense<0.000000e+00> : vector<256x128xf32>
    %2 = tpu.matmul %0, %1, %cst {dimension_numbers = #tpu.dot_dimension_numbers<[1], [0], [0], [1], [0, 0, 1, 1], [], []>} : vector<256x256xbf16>, vector<256x128xbf16>, vector<256x128xf32> -> vector<256x128xf32>
    %c0_3 = arith.constant 0 : index
    %c0_4 = arith.constant 0 : index
    %3 = vector.load %arg4[%c0_3, %c0_4] : memref<1x128xf32, #tpu.memory_space<vmem>>, vector<1x128xf32>
    %4 = vector.broadcast %3 : vector<1x128xf32> to vector<256x128xf32>
    %5 = arith.addf %2, %4 : vector<256x128xf32>
    %cst_5 = arith.constant 0.000000e+00 : f32
    %6 = vector.broadcast %cst_5 : f32 to vector<256x128xf32>
    %7 = arith.maximumf %5, %6 : vector<256x128xf32>
    %c0_6 = arith.constant 0 : index
    %c0_7 = arith.constant 0 : index
    %8 = vector.load %arg5[%c0_6, %c0_7] : memref<256x128xf32, #tpu.memory_space<vmem>>, vector<256x128xf32>
    tpu.vector_store %arg5[%c0_6, %c0_7], %7 {strides = array<i32>} : memref<256x128xf32, #tpu.memory_space<vmem>>, vector<256x128xf32>,
    return
  }
  func.func @transform_0(%arg0: i32, %arg1: i32) -> (i32, i32) {
    %c0_i32 = arith.constant 0 : i32
    %c0_i32_0 = arith.constant 0 : i32
    return %arg0, %c0_i32 : i32, i32
  }
  func.func @transform_1(%arg0: i32, %arg1: i32) -> (i32, i32) {
    %c0_i32 = arith.constant 0 : i32
    %c0_i32_0 = arith.constant 0 : i32
    return %c0_i32, %arg1 : i32, i32
  }
  func.func @transform_2(%arg0: i32, %arg1: i32) -> (i32, i32) {
    %c0_i32 = arith.constant 0 : i32
    %c0_i32_0 = arith.constant 0 : i32
    return %c0_i32, %arg1 : i32, i32
  }
  func.func @transform_3(%arg0: i32, %arg1: i32) -> (i32, i32) {
    %c0_i32 = arith.constant 0 : i32
    return %arg0, %arg1 : i32, i32
  }
}

</mosaic_0001>

<llo_original>
// kernel: inception_forward.2
$region0: #{inception_forward.2}
  #allocation0 [shape = 'u32[]', space=smem, size = 0x4, offset = 0x4, fixed_abs, tag = 'smem constant byte address 0x4 - core index']
  #allocation1 [shape = 'u32[144,128]{1,0:T(1,128)}', space=vmem, size = 0x12000, scoped, tag = 'internal scratch']
  %s0 = inlined_call_operand.vmem [shape: bf16[512,128], index: 0, kind: input, shape index: {}]
  %s1 = inlined_call_operand.vmem [shape: bf16[128,128], index: 1, kind: input, shape index: {}]
  %s2 = inlined_call_operand.vmem [shape: f32[1,128], index: 2, kind: input, shape index: {}]
  %s3 = inlined_call_operand.vmem [shape: f32[512,128], index: 3, kind: output, shape index: {}]
  %s4 = sld [smem:[#allocation0]]
  $region45: #{inception_forward.2} parent=0
    _
  %s6 = ssub.s32 1, %s4
  %s7 = scalar_select 0, %s6, %s4
  loop: start=0, step=1, limit=4
  $region2: #{inception_forward.2} parent=0 // loop_pre_header
    _
  $region3: #{inception_forward.2} parent=0 // loop_header
    %s9 = sphi 0, %s13
    %p10 = scmp.ge.s32.totalorder %s9, 4
    %s16 = sphi 0, %s28
    %s17 = sphi 0, %s24
    %s18 = sphi 0, %s16
    %s19 = sphi 0, %s17
    %s20 = sphi 0, %s18
    %s21 = sphi 0, %s19
    %s31 = sphi 0, %s33
    %s34 = sphi 0, %s31
    %s35 = sphi 0, %s34
    %s51 = sphi 0, %s35
    %s57 = sphi 0, %s59
    %s60 = sphi 0, %s57
    %s61 = sphi 0, %s60
    %s77 = sphi 0, %s61
    %s83 = sphi 0, %s85
    %s86 = sphi 0, %s83
    %s87 = sphi 0, %s86
    %s103 = sphi 0, %s87
    %s111 = sphi 0, %s113
    %s114 = sphi 0, %s111
    %s115 = sphi 0, %s114
    %s131 = sphi 0, %s115
  $region4: #{inception_forward.2} parent=0 // loop_header_branch
    %12 = sbr.rel (%p10) target = $region8
  $region5: #{inception_forward.2} parent=0 // loop_body
    %s14 = ssub.s32 %s9, 1
    %s15 = ssub.s32 %s9, 2
    %s22 = sadd.s32 1, %s17
    %p23 = scmp.ge.s32.totalorder %s22, 1
    %s24 = scalar_select %p23, 0, %s22
    %s25 = sadd.s32 1, %s16
    %s26 = scalar_select %p23, %s25, %s16
    %p27 = scmp.ge.s32.totalorder %s26, 2
    %s28 = scalar_select %p27, 0, %s26
    %s29 = ssub.s32 %s16, %s28
    %p30 = scmp.eq.s32.totalorder %s29, 0
    %s32 = sadd.s32 %s31, 1
    %s33 = scalar_select %p30, %s31, %s32
    %p36 = pneg %p30
    %p37 = scmp.eq.s32.totalorder %s9, 1
    %p38 = por %p36, %p37
    %p39 = scmp.ne.s32.totalorder %s31, %s34
    %p40 = scmp.eq.s32.totalorder %s9, 0
    %p41 = por %p39, %p40
    %p42 = scmp.ne.s32.totalorder %s31, %s34
    %p43 = scmp.eq.s32.totalorder %s14, 1
    %p44 = por %p42, %p43
    %p45 = scmp.ne.s32.totalorder %s34, %s35
    %p46 = scmp.eq.s32.totalorder %s14, 0
    %p47 = por %p45, %p46
    %p48 = scmp.ne.s32.totalorder %s34, %s35
    %p49 = scmp.eq.s32.totalorder %s15, 1
    %p50 = por %p48, %p49
    %p52 = scmp.ne.s32.totalorder %s35, %s51
    %p53 = scmp.eq.s32.totalorder %s15, 0
    %p54 = por %p52, %p53
    %s55 = ssub.s32 %s17, %s24
    %p56 = scmp.eq.s32.totalorder %s55, 0
    %s58 = sadd.s32 %s57, 1
    %s59 = scalar_select %p56, %s57, %s58
    %p62 = pneg %p56
    %p63 = scmp.eq.s32.totalorder %s9, 1
    %p64 = por %p62, %p63
    %p65 = scmp.ne.s32.totalorder %s57, %s60
    %p66 = scmp.eq.s32.totalorder %s9, 0
    %p67 = por %p65, %p66
    %p68 = scmp.ne.s32.totalorder %s57, %s60
    %p69 = scmp.eq.s32.totalorder %s14, 1
    %p70 = por %p68, %p69
    %p71 = scmp.ne.s32.totalorder %s60, %s61
    %p72 = scmp.eq.s32.totalorder %s14, 0
    %p73 = por %p71, %p72
    %p74 = scmp.ne.s32.totalorder %s60, %s61
    %p75 = scmp.eq.s32.totalorder %s15, 1
    %p76 = por %p74, %p75
    %p78 = scmp.ne.s32.totalorder %s61, %s77
    %p79 = scmp.eq.s32.totalorder %s15, 0
    %p80 = por %p78, %p79
    %s81 = ssub.s32 %s17, %s24
    %p82 = scmp.eq.s32.totalorder %s81, 0
    %s84 = sadd.s32 %s83, 1
    %s85 = scalar_select %p82, %s83, %s84
    %p88 = pneg %p82
    %p89 = scmp.eq.s32.totalorder %s9, 1
    %p90 = por %p88, %p89
    %p91 = scmp.ne.s32.totalorder %s83, %s86
    %p92 = scmp.eq.s32.totalorder %s9, 0
    %p93 = por %p91, %p92
    %p94 = scmp.ne.s32.totalorder %s83, %s86
    %p95 = scmp.eq.s32.totalorder %s14, 1
    %p96 = por %p94, %p95
    %p97 = scmp.ne.s32.totalorder %s86, %s87
    %p98 = scmp.eq.s32.totalorder %s14, 0
    %p99 = por %p97, %p98
    %p100 = scmp.ne.s32.totalorder %s86, %s87
    %p101 = scmp.eq.s32.totalorder %s15, 1
    %p102 = por %p100, %p101
    %p104 = scmp.ne.s32.totalorder %s87, %s103
    %p105 = scmp.eq.s32.totalorder %s15, 0
    %p106 = por %p104, %p105
    %s107 = ssub.s32 %s16, %s28
    %s108 = ssub.s32 %s17, %s24
    %s109 = sor.u32 %s107, %s108
    %p110 = scmp.eq.s32.totalorder %s109, 0
    %s112 = sadd.s32 %s111, 1
    %s113 = scalar_select %p110, %s111, %s112
    %p116 = pneg %p110
    %p117 = scmp.eq.s32.totalorder %s9, 1
    %p118 = por %p116, %p117
    %p119 = scmp.ne.s32.totalorder %s111, %s114
    %p120 = scmp.eq.s32.totalorder %s9, 0
    %p121 = por %p119, %p120
    %p122 = scmp.ne.s32.totalorder %s111, %s114
    %p123 = scmp.eq.s32.totalorder %s14, 1
    %p124 = por %p122, %p123
    %p125 = scmp.ne.s32.totalorder %s114, %s115
    %p126 = scmp.eq.s32.totalorder %s14, 0
    %p127 = por %p125, %p126
    %p128 = scmp.ne.s32.totalorder %s114, %s115
    %p129 = scmp.eq.s32.totalorder %s15, 1
    %p130 = por %p128, %p129
    %p132 = scmp.ne.s32.totalorder %s115, %s131
    %p133 = scmp.eq.s32.totalorder %s15, 0
    %p134 = por %p132, %p133
    %p135 = scmp.le.s32.totalorder 1, %s9
    %p136 = scmp.lt.s32.totalorder %s9, 3
    %p137 = pnand %p135, %p136
    %p138 = pneg %p137
    // Predicated region
    $region9: #{inception_forward.2} parent=5 // pred_check
      _
    $region10: #{inception_forward.2} parent=5 // pred_check_branch
      %140 = sbr.rel (%p137) target = $region12
    $region11: #{inception_forward.2} parent=5 // pred_region
      %s141 = ssub.s32 %s9, 1
      // Predicated region
      $region13: #{inception_forward.2} parent=11 // pred_check
        %p142 = pneg %p73
      $region14: #{inception_forward.2} parent=11 // pred_check_branch
        %144 = sbr.rel (%p142) target = $region16
      $region15: #{inception_forward.2} parent=11 // pred_region
        %p145 = scmp.lt.s32.totalorder %s19, 0
        %s146 = scalar_select %p145, %s19, 0
        %s147 = smul.addr %s146, 4
        %s148 = scalar_lea.vmem %s1, %s147
      $region16: #{inception_forward.2} parent=11 // pred_fallthru
        _
      // Predicated region
      $region17: #{inception_forward.2} parent=11 // pred_check
        %p149 = pneg %p99
      $region18: #{inception_forward.2} parent=11 // pred_check_branch
        %151 = sbr.rel (%p149) target = $region20
      $region19: #{inception_forward.2} parent=11 // pred_region
        %p152 = scmp.lt.s32.totalorder %s19, 0
        %s153 = scalar_select %p152, %s19, 0
        %s154 = scalar_lea.vmem %s2, %s153
      $region20: #{inception_forward.2} parent=11 // pred_fallthru
        _
    $region12: #{inception_forward.2} parent=5 // pred_fallthru
      _
    %p155 = scmp.lt.s32.totalorder %s9, 2
    // Predicated region
    $region21: #{inception_forward.2} parent=5 // pred_check
      %p156 = pneg %p155
    $region22: #{inception_forward.2} parent=5 // pred_check_branch
      %158 = sbr.rel (%p156) target = $region24
    $region23: #{inception_forward.2} parent=5 // pred_region
      // Predicated region
      $region25: #{inception_forward.2} parent=23 // pred_check
        %p159 = pneg %p41
      $region26: #{inception_forward.2} parent=23 // pred_check_branch
        %161 = sbr.rel (%p159) target = $region28
      $region27: #{inception_forward.2} parent=23 // pred_region
        %s162 = smul.u32 32, %s16
        %p163 = scmp.lt.s32.totalorder %s162, 63
        %s164 = scalar_select %p163, %s162, 63
        %s165 = smul.addr %s164, 4
        %s166 = scalar_lea.vmem %s0, %s165
        %s167 = smul.u32 32, %s16
      $region28: #{inception_forward.2} parent=23 // pred_fallthru
        _
    $region24: #{inception_forward.2} parent=5 // pred_fallthru
      _
    %p168 = scmp.le.s32.totalorder 1, %s9
    %p169 = scmp.lt.s32.totalorder %s9, 3
    %p170 = pnand %p168, %p169
    %p171 = pneg %p170
    // Predicated region
    $region29: #{inception_forward.2} parent=5 // pred_check
      _
    $region30: #{inception_forward.2} parent=5 // pred_check_branch
      %173 = sbr.rel (%p170) target = $region32
    $region31: #{inception_forward.2} parent=5 // pred_region
      %s174 = ssub.s32 %s9, 1
      %s175 = smul.u32 32, %s18
      %p176 = scmp.lt.s32.totalorder %s175, 63
      %s177 = scalar_select %p176, %s175, 63
      %s178 = smul.addr %s177, 4
      %s179 = scalar_lea.vmem %s0, %s178
      %p180 = pneg %p47
      %p181 = pneg %p44
      %p182 = scmp.lt.s32.totalorder %s19, 0
      %s183 = scalar_select %p182, %s19, 0
      %s184 = smul.addr %s183, 4
      %s185 = scalar_lea.vmem %s1, %s184
      %p186 = pneg %p73
      %p187 = pneg %p70
      %p188 = scmp.lt.s32.totalorder %s19, 0
      %s189 = scalar_select %p188, %s19, 0
      %s190 = scalar_lea.vmem %s2, %s189
      %p191 = pneg %p99
      %p192 = pneg %p96
      %p193 = pneg %p127
      %p194 = pneg %p124
      %s195 = smul.u32 32, %s18
      %p196 = scmp.lt.s32.totalorder %s195, 63
      %s197 = scalar_select %p196, %s195, 63
      %p198 = scmp.lt.s32.totalorder %s19, 0
      %s199 = scalar_select %p198, %s19, 0
      %s200 = sadd.s32 %s199, %s197
      %s201 = smul.addr %s200, 8
      %s202 = scalar_lea.vmem %s3, %s201
      %s203 = smul.u32 32, %s18
      %p204 = scmp.lt.s32.totalorder %s203, 63
      %s205 = scalar_select %p204, %s203, 63
      %s206 = smul.addr %s205, 4
      %s207 = scalar_lea.vmem %s0, %s206
      %s208 = smul.u32 32, %s18
      %p209 = scmp.lt.s32.totalorder %s19, 0
      %s210 = scalar_select %p209, %s19, 0
      %s211 = smul.addr %s210, 4
      %s212 = scalar_lea.vmem %s1, %s211
      %p213 = scmp.lt.s32.totalorder %s19, 0
      %s214 = scalar_select %p213, %s19, 0
      %s215 = scalar_lea.vmem %s2, %s214
      %s216 = smul.u32 32, %s18
      %p217 = scmp.lt.s32.totalorder %s216, 63
      %s218 = scalar_select %p217, %s216, 63
      %p219 = scmp.lt.s32.totalorder %s19, 0
      %s220 = scalar_select %p219, %s19, 0
      %s221 = sadd.s32 %s220, %s218
      %s222 = smul.addr %s221, 8
      %s223 = scalar_lea.vmem %s3, %s222
      %s224 = smul.u32 32, %s18
      %v226 = vld [vmem:[%s207] sm:$0xf]
      %v227 = vld [vmem:[%s207 + $0x4] sm:$0xf]
      %v228 = vld [vmem:[%s207 + $0x8] sm:$0xf]
      %v229 = vld [vmem:[%s207 + $0xc] sm:$0xf]
      %v230 = vld [vmem:[%s207 + $0x10] sm:$0xf]
      %v231 = vld [vmem:[%s207 + $0x14] sm:$0xf]
      %v232 = vld [vmem:[%s207 + $0x18] sm:$0xf]
      %v233 = vld [vmem:[%s207 + $0x1c] sm:$0xf]
      %v234 = vld [vmem:[%s207 + $0x20] sm:$0xf]
      %v235 = vld [vmem:[%s207 + $0x24] sm:$0xf]
      %v236 = vld [vmem:[%s207 + $0x28] sm:$0xf]
      %v237 = vld [vmem:[%s207 + $0x2c] sm:$0xf]
      %v238 = vld [vmem:[%s207 + $0x30] sm:$0xf]
      %v239 = vld [vmem:[%s207 + $0x34] sm:$0xf]
      %v240 = vld [vmem:[%s207 + $0x38] sm:$0xf]
      %v241 = vld [vmem:[%s207 + $0x3c] sm:$0xf]
      %v242 = vld [vmem:[%s207 + $0x40] sm:$0xf]
      %v243 = vld [vmem:[%s207 + $0x44] sm:$0xf]
      %v244 = vld [vmem:[%s207 + $0x48] sm:$0xf]
      %v245 = vld [vmem:[%s207 + $0x4c] sm:$0xf]
      %v246 = vld [vmem:[%s207 + $0x50] sm:$0xf]
      %v247 = vld [vmem:[%s207 + $0x54] sm:$0xf]
      %v248 = vld [vmem:[%s207 + $0x58] sm:$0xf]
      %v249 = vld [vmem:[%s207 + $0x5c] sm:$0xf]
      %v250 = vld [vmem:[%s207 + $0x60] sm:$0xf]
      %v251 = vld [vmem:[%s207 + $0x64] sm:$0xf]
      %v252 = vld [vmem:[%s207 + $0x68] sm:$0xf]
      %v253 = vld [vmem:[%s207 + $0x6c] sm:$0xf]
      %v254 = vld [vmem:[%s207 + $0x70] sm:$0xf]
      %v255 = vld [vmem:[%s207 + $0x74] sm:$0xf]
      %v256 = vld [vmem:[%s207 + $0x78] sm:$0xf]
      %v257 = vld [vmem:[%s207 + $0x7c] sm:$0xf]
      %v258 = vld [vmem:[%s212] sm:$0xf]
      %v259 = vld [vmem:[%s212 + $0x4] sm:$0xf]
      %v260 = vld [vmem:[%s212 + $0x8] sm:$0xf]
      %v261 = vld [vmem:[%s212 + $0xc] sm:$0xf]
      %v262 = vld [vmem:[%s212 + $0x10] sm:$0xf]
      %v263 = vld [vmem:[%s212 + $0x14] sm:$0xf]
      %v264 = vld [vmem:[%s212 + $0x18] sm:$0xf]
      %v265 = vld [vmem:[%s212 + $0x1c] sm:$0xf]
      %v266 = vld [vmem:[%s212 + $0x20] sm:$0xf]
      %v267 = vld [vmem:[%s212 + $0x24] sm:$0xf]
      %v268 = vld [vmem:[%s212 + $0x28] sm:$0xf]
      %v269 = vld [vmem:[%s212 + $0x2c] sm:$0xf]
      %v270 = vld [vmem:[%s212 + $0x30] sm:$0xf]
      %v271 = vld [vmem:[%s212 + $0x34] sm:$0xf]
      %v272 = vld [vmem:[%s212 + $0x38] sm:$0xf]
      %v273 = vld [vmem:[%s212 + $0x3c] sm:$0xf]
      %v274 = vld [vmem:[%s215] sm:$0x1]
      %v276 = vlaneseq
      %v277 = vshrl.u32 %v276, 7
      %v278 = vsub.s32 0, %v277
      %v279 = vrot.slane %v274, %v278
      %v313 = vunpack.c.l.b16 %v226
      %v314 = vunpack.c.l.b16 %v227
      %v315 = vunpack.c.l.b16 %v228
      %v316 = vunpack.c.l.b16 %v229
      %v317 = vunpack.c.l.b16 %v230
      %v318 = vunpack.c.l.b16 %v231
      %v319 = vunpack.c.l.b16 %v232
      %v320 = vunpack.c.l.b16 %v233
      %v321 = vunpack.c.l.b16 %v234
      %v322 = vunpack.c.l.b16 %v235
      %v323 = vunpack.c.l.b16 %v236
      %v324 = vunpack.c.l.b16 %v237
      %v325 = vunpack.c.l.b16 %v238
      %v326 = vunpack.c.l.b16 %v239
      %v327 = vunpack.c.l.b16 %v240
      %v328 = vunpack.c.l.b16 %v241
      %v329 = vunpack.c.l.b16 %v242
      %v330 = vunpack.c.l.b16 %v243
      %v331 = vunpack.c.l.b16 %v244
      %v332 = vunpack.c.l.b16 %v245
      %v333 = vunpack.c.l.b16 %v246
      %v334 = vunpack.c.l.b16 %v247
      %v335 = vunpack.c.l.b16 %v248
      %v336 = vunpack.c.l.b16 %v249
      %v337 = vunpack.c.l.b16 %v250
      %v338 = vunpack.c.l.b16 %v251
      %v339 = vunpack.c.l.b16 %v252
      %v340 = vunpack.c.l.b16 %v253
      %v341 = vunpack.c.l.b16 %v254
      %v342 = vunpack.c.l.b16 %v255
      %v343 = vunpack.c.l.b16 %v256
      %v344 = vunpack.c.l.b16 %v257
      %v345 = vpack.c.b16 %v314, %v313
      %v346 = vpack.c.b16 %v316, %v315
      %v347 = vpack.c.b16 %v318, %v317
      %v348 = vpack.c.b16 %v320, %v319
      %v349 = vpack.c.b16 %v322, %v321
      %v350 = vpack.c.b16 %v324, %v323
      %v351 = vpack.c.b16 %v326, %v325
      %v352 = vpack.c.b16 %v328, %v327
      %v353 = vpack.c.b16 %v330, %v329
      %v354 = vpack.c.b16 %v332, %v331
      %v355 = vpack.c.b16 %v334, %v333
      %v356 = vpack.c.b16 %v336, %v335
      %v357 = vpack.c.b16 %v338, %v337
      %v358 = vpack.c.b16 %v340, %v339
      %v359 = vpack.c.b16 %v342, %v341
      %v360 = vpack.c.b16 %v344, %v343
      %v393 = vunpack.c.l.b16 %v258
      %v394 = vunpack.c.l.b16 %v259
      %v395 = vunpack.c.l.b16 %v260
      %v396 = vunpack.c.l.b16 %v261
      %v397 = vunpack.c.l.b16 %v262
      %v398 = vunpack.c.l.b16 %v263
      %v399 = vunpack.c.l.b16 %v264
      %v400 = vunpack.c.l.b16 %v265
      %v401 = vunpack.c.l.b16 %v266
      %v402 = vunpack.c.l.b16 %v267
      %v403 = vunpack.c.l.b16 %v268
      %v404 = vunpack.c.l.b16 %v269
      %v405 = vunpack.c.l.b16 %v270
      %v406 = vunpack.c.l.b16 %v271
      %v407 = vunpack.c.l.b16 %v272
      %v408 = vunpack.c.l.b16 %v273
      %v409 = vpack.c.b16 %v394, %v393
      %v410 = vpack.c.b16 %v396, %v395
      %v411 = vpack.c.b16 %v398, %v397
      %v412 = vpack.c.b16 %v400, %v399
      %v413 = vpack.c.b16 %v402, %v401
      %v414 = vpack.c.b16 %v404, %v403
      %v415 = vpack.c.b16 %v406, %v405
      %v416 = vpack.c.b16 %v408, %v407
      %425 = vmatprep.subr.bf16.mxu0 0
      %426 = vmatpush1.bf16.msra.mxu0 %v409
      %427 = vmatprep.subr.bf16.mxu0 0
      %428 = vmatpush1.bf16.msra.mxu0 %v410
      %429 = vmatprep.subr.bf16.mxu0 0
      %430 = vmatpush1.bf16.msra.mxu0 %v411
      %431 = vmatprep.subr.bf16.mxu0 0
      %432 = vmatpush1.bf16.msra.mxu0 %v412
      %433 = vmatprep.subr.bf16.mxu0 0
      %434 = vmatpush1.bf16.msra.mxu0 %v413
      %435 = vmatprep.subr.bf16.mxu0 0
      %436 = vmatpush1.bf16.msra.mxu0 %v414
      %437 = vmatprep.subr.bf16.mxu0 0
      %438 = vmatpush1.bf16.msra.mxu0 %v415
      %439 = vmatprep.subr.bf16.mxu0 0
      %440 = vmatpush1.bf16.msra.mxu0 %v416
      %441 = vmatprep.subr.bf16.mxu0 0
      %442 = vmatpush1.bf16.msra.mxu0 0
      %443 = vmatprep.subr.bf16.mxu0 0
      %444 = vmatpush1.bf16.msra.mxu0 0
      %445 = vmatprep.subr.bf16.mxu0 0
      %446 = vmatpush1.bf16.msra.mxu0 0
      %447 = vmatprep.subr.bf16.mxu0 0
      %448 = vmatpush1.bf16.msra.mxu0 0
      %449 = vmatprep.subr.bf16.mxu0 0
      %450 = vmatpush1.bf16.msra.mxu0 0
      %451 = vmatprep.subr.bf16.mxu0 0
      %452 = vmatpush1.bf16.msra.mxu0 0
      %453 = vmatprep.subr.bf16.mxu0 0
      %454 = vmatpush1.bf16.msra.mxu0 0
      %455 = vmatprep.subr.bf16.mxu0 0
      %456 = vmatpush1.bf16.msra.mxu0 0
      %457 = vmatprep.mubr.bf16.mxu0 0
      %458 = vmatmul.mubr.bf16.gmra.mrb[0].mxu0 %v345
      %v459 = vpop.f32.mrb[0].mxu0
      %v460 = vadd.f32 %v279, %v459
      %v461 = vpop.f32.mrb[0].mxu0
      %v462 = vpop.f32.mrb[0].mxu0
      %v463 = vadd.f32 %v279, %v462
      %v464 = vpop.f32.mrb[0].mxu0
      %465 = vmatprep.mubr.bf16.mxu0 0
      %466 = vmatmul.mubr.bf16.gmra.mrb[0].mxu0 %v346
      %v467 = vpop.f32.mrb[0].mxu0
      %v468 = vadd.f32 %v279, %v467
      %v469 = vpop.f32.mrb[0].mxu0
      %v470 = vpop.f32.mrb[0].mxu0
      %v471 = vadd.f32 %v279, %v470
      %v472 = vpop.f32.mrb[0].mxu0
      %473 = vmatprep.mubr.bf16.mxu0 0
      %474 = vmatmul.mubr.bf16.gmra.mrb[0].mxu0 %v347
      %v475 = vpop.f32.mrb[0].mxu0
      %v476 = vadd.f32 %v279, %v475
      %v477 = vpop.f32.mrb[0].mxu0
      %v478 = vpop.f32.mrb[0].mxu0
      %v479 = vadd.f32 %v279, %v478
      %v480 = vpop.f32.mrb[0].mxu0
      %481 = vmatprep.mubr.bf16.mxu0 0
      %482 = vmatmul.mubr.bf16.gmra.mrb[0].mxu0 %v348
      %v483 = vpop.f32.mrb[0].mxu0
      %v484 = vadd.f32 %v279, %v483
      %v485 = vpop.f32.mrb[0].mxu0
      %v486 = vpop.f32.mrb[0].mxu0
      %v487 = vadd.f32 %v279, %v486
      %v488 = vpop.f32.mrb[0].mxu0
      %489 = vmatprep.mubr.bf16.mxu0 0
      %490 = vmatmul.mubr.bf16.gmra.mrb[0].mxu0 %v349
      %v491 = vpop.f32.mrb[0].mxu0
      %v492 = vadd.f32 %v279, %v491
      %v493 = vpop.f32.mrb[0].mxu0
      %v494 = vpop.f32.mrb[0].mxu0
      %v495 = vadd.f32 %v279, %v494
      %v496 = vpop.f32.mrb[0].mxu0
      %497 = vmatprep.mubr.bf16.mxu0 0
      %498 = vmatmul.mubr.bf16.gmra.mrb[0].mxu0 %v350
      %v499 = vpop.f32.mrb[0].mxu0
      %v500 = vadd.f32 %v279, %v499
      %v501 = vpop.f32.mrb[0].mxu0
      %v502 = vpop.f32.mrb[0].mxu0
      %v503 = vadd.f32 %v279, %v502
      %v504 = vpop.f32.mrb[0].mxu0
      %505 = vmatprep.mubr.bf16.mxu0 0
      %506 = vmatmul.mubr.bf16.gmra.mrb[0].mxu0 %v351
      %v507 = vpop.f32.mrb[0].mxu0
      %v508 = vadd.f32 %v279, %v507
      %v509 = vpop.f32.mrb[0].mxu0
      %v510 = vpop.f32.mrb[0].mxu0
      %v511 = vadd.f32 %v279, %v510
      %v512 = vpop.f32.mrb[0].mxu0
      %513 = vmatprep.mubr.bf16.mxu0 0
      %514 = vmatmul.mubr.bf16.gmra.mrb[0].mxu0 %v352
      %v515 = vpop.f32.mrb[0].mxu0
      %v516 = vadd.f32 %v279, %v515
      %v517 = vpop.f32.mrb[0].mxu0
      %v518 = vpop.f32.mrb[0].mxu0
      %v519 = vadd.f32 %v279, %v518
      %v520 = vpop.f32.mrb[0].mxu0
      %521 = vmatprep.mubr.bf16.mxu0 0
      %522 = vmatmul.mubr.bf16.gmra.mrb[0].mxu0 %v353
      %v523 = vpop.f32.mrb[0].mxu0
      %v524 = vadd.f32 %v279, %v523
      %v525 = vpop.f32.mrb[0].mxu0
      %v526 = vpop.f32.mrb[0].mxu0
      %v527 = vadd.f32 %v279, %v526
      %v528 = vpop.f32.mrb[0].mxu0
      %529 = vmatprep.mubr.bf16.mxu0 0
      %530 = vmatmul.mubr.bf16.gmra.mrb[0].mxu0 %v354
      %v531 = vpop.f32.mrb[0].mxu0
      %v532 = vadd.f32 %v279, %v531
      %v533 = vpop.f32.mrb[0].mxu0
      %v534 = vpop.f32.mrb[0].mxu0
      %v535 = vadd.f32 %v279, %v534
      %v536 = vpop.f32.mrb[0].mxu0
      %537 = vmatprep.mubr.bf16.mxu0 0
      %538 = vmatmul.mubr.bf16.gmra.mrb[0].mxu0 %v355
      %v539 = vpop.f32.mrb[0].mxu0
      %v540 = vadd.f32 %v279, %v539
      %v541 = vpop.f32.mrb[0].mxu0
      %v542 = vpop.f32.mrb[0].mxu0
      %v543 = vadd.f32 %v279, %v542
      %v544 = vpop.f32.mrb[0].mxu0
      %545 = vmatprep.mubr.bf16.mxu0 0
      %546 = vmatmul.mubr.bf16.gmra.mrb[0].mxu0 %v356
      %v547 = vpop.f32.mrb[0].mxu0
      %v548 = vadd.f32 %v279, %v547
      %v549 = vpop.f32.mrb[0].mxu0
      %v550 = vpop.f32.mrb[0].mxu0
      %v551 = vadd.f32 %v279, %v550
      %v552 = vpop.f32.mrb[0].mxu0
      %553 = vmatprep.mubr.bf16.mxu0 0
      %554 = vmatmul.mubr.bf16.gmra.mrb[0].mxu0 %v357
      %v555 = vpop.f32.mrb[0].mxu0
      %v556 = vadd.f32 %v279, %v555
      %v557 = vpop.f32.mrb[0].mxu0
      %v558 = vpop.f32.mrb[0].mxu0
      %v559 = vadd.f32 %v279, %v558
      %v560 = vpop.f32.mrb[0].mxu0
      %561 = vmatprep.mubr.bf16.mxu0 0
      %562 = vmatmul.mubr.bf16.gmra.mrb[0].mxu0 %v358
      %v563 = vpop.f32.mrb[0].mxu0
      %v564 = vadd.f32 %v279, %v563
      %v565 = vpop.f32.mrb[0].mxu0
      %v566 = vpop.f32.mrb[0].mxu0
      %v567 = vadd.f32 %v279, %v566
      %v568 = vpop.f32.mrb[0].mxu0
      %569 = vmatprep.mubr.bf16.mxu0 0
      %570 = vmatmul.mubr.bf16.gmra.mrb[0].mxu0 %v359
      %v571 = vpop.f32.mrb[0].mxu0
      %v572 = vadd.f32 %v279, %v571
      %v573 = vpop.f32.mrb[0].mxu0
      %v574 = vpop.f32.mrb[0].mxu0
      %v575 = vadd.f32 %v279, %v574
      %v576 = vpop.f32.mrb[0].mxu0
      %577 = vmatprep.mubr.bf16.mxu0 0
      %578 = vmatmul.mubr.bf16.gmra.mrb[0].mxu0 %v360
      %v579 = vpop.f32.mrb[0].mxu0
      %v580 = vadd.f32 %v279, %v579
      %v581 = vpop.f32.mrb[0].mxu0
      %v582 = vpop.f32.mrb[0].mxu0
      %v583 = vadd.f32 %v279, %v582
      %v584 = vpop.f32.mrb[0].mxu0
      %585 = vdwg.mxu0
      %v586 = vmax.f32 %v460, 0.0
      %v587 = vmax.f32 %v463, 0.0
      %v588 = vmax.f32 %v468, 0.0
      %v589 = vmax.f32 %v471, 0.0
      %v590 = vmax.f32 %v476, 0.0
      %v591 = vmax.f32 %v479, 0.0
      %v592 = vmax.f32 %v484, 0.0
      %v593 = vmax.f32 %v487, 0.0
      %v594 = vmax.f32 %v492, 0.0
      %v595 = vmax.f32 %v495, 0.0
      %v596 = vmax.f32 %v500, 0.0
      %v597 = vmax.f32 %v503, 0.0
      %v598 = vmax.f32 %v508, 0.0
      %v599 = vmax.f32 %v511, 0.0
      %v600 = vmax.f32 %v516, 0.0
      %v601 = vmax.f32 %v519, 0.0
      %v602 = vmax.f32 %v524, 0.0
      %v603 = vmax.f32 %v527, 0.0
      %v604 = vmax.f32 %v532, 0.0
      %v605 = vmax.f32 %v535, 0.0
      %v606 = vmax.f32 %v540, 0.0
      %v607 = vmax.f32 %v543, 0.0
      %v608 = vmax.f32 %v548, 0.0
      %v609 = vmax.f32 %v551, 0.0
      %v610 = vmax.f32 %v556, 0.0
      %v611 = vmax.f32 %v559, 0.0
      %v612 = vmax.f32 %v564, 0.0
      %v613 = vmax.f32 %v567, 0.0
      %v614 = vmax.f32 %v572, 0.0
      %v615 = vmax.f32 %v575, 0.0
      %v616 = vmax.f32 %v580, 0.0
      %v617 = vmax.f32 %v583, 0.0
      %618 = vst [vmem:[%s223] sm:$0xff] %v586
      %619 = vst [vmem:[%s223 + $0x8] sm:$0xff] %v587
      %620 = vst [vmem:[%s223 + $0x10] sm:$0xff] %v588
      %621 = vst [vmem:[%s223 + $0x18] sm:$0xff] %v589
      %622 = vst [vmem:[%s223 + $0x20] sm:$0xff] %v590
      %623 = vst [vmem:[%s223 + $0x28] sm:$0xff] %v591
      %624 = vst [vmem:[%s223 + $0x30] sm:$0xff] %v592
      %625 = vst [vmem:[%s223 + $0x38] sm:$0xff] %v593
      %626 = vst [vmem:[%s223 + $0x40] sm:$0xff] %v594
      %627 = vst [vmem:[%s223 + $0x48] sm:$0xff] %v595
      %628 = vst [vmem:[%s223 + $0x50] sm:$0xff] %v596
      %629 = vst [vmem:[%s223 + $0x58] sm:$0xff] %v597
      %630 = vst [vmem:[%s223 + $0x60] sm:$0xff] %v598
      %631 = vst [vmem:[%s223 + $0x68] sm:$0xff] %v599
      %632 = vst [vmem:[%s223 + $0x70] sm:$0xff] %v600
      %633 = vst [vmem:[%s223 + $0x78] sm:$0xff] %v601
      %634 = vst [vmem:[%s223 + $0x80] sm:$0xff] %v602
      %635 = vst [vmem:[%s223 + $0x88] sm:$0xff] %v603
      %636 = vst [vmem:[%s223 + $0x90] sm:$0xff] %v604
      %637 = vst [vmem:[%s223 + $0x98] sm:$0xff] %v605
      %638 = vst [vmem:[%s223 + $0xa0] sm:$0xff] %v606
      %639 = vst [vmem:[%s223 + $0xa8] sm:$0xff] %v607
      %640 = vst [vmem:[%s223 + $0xb0] sm:$0xff] %v608
      %641 = vst [vmem:[%s223 + $0xb8] sm:$0xff] %v609
      %642 = vst [vmem:[%s223 + $0xc0] sm:$0xff] %v610
      %643 = vst [vmem:[%s223 + $0xc8] sm:$0xff] %v611
      %644 = vst [vmem:[%s223 + $0xd0] sm:$0xff] %v612
      %645 = vst [vmem:[%s223 + $0xd8] sm:$0xff] %v613
      %646 = vst [vmem:[%s223 + $0xe0] sm:$0xff] %v614
      %647 = vst [vmem:[%s223 + $0xe8] sm:$0xff] %v615
      %648 = vst [vmem:[%s223 + $0xf0] sm:$0xff] %v616
      %649 = vst [vmem:[%s223 + $0xf8] sm:$0xff] %v617
      %s650 = smul.u32 32, %s18
      %p651 = scmp.lt.s32.totalorder %s650, 63
      %s652 = scalar_select %p651, %s650, 63
      %p653 = scmp.lt.s32.totalorder %s19, 0
      %s654 = scalar_select %p653, %s19, 0
      %s655 = sadd.s32 %s654, %s652
      %s656 = smul.addr %s655, 8
      %s657 = scalar_lea.vmem %s3, %s656
      // Predicated region
      $region33: #{inception_forward.2} parent=31 // pred_check
        %p658 = pneg %p124
      $region34: #{inception_forward.2} parent=31 // pred_check_branch
        %660 = sbr.rel (%p658) target = $region36
      $region35: #{inception_forward.2} parent=31 // pred_region
        %s661 = smul.u32 32, %s18
      $region36: #{inception_forward.2} parent=31 // pred_fallthru
        _
    $region32: #{inception_forward.2} parent=5 // pred_fallthru
      _
    %p662 = scmp.le.s32.totalorder 2, %s9
    // Predicated region
    $region37: #{inception_forward.2} parent=5 // pred_check
      %p663 = pneg %p662
    $region38: #{inception_forward.2} parent=5 // pred_check_branch
      %665 = sbr.rel (%p663) target = $region40
    $region39: #{inception_forward.2} parent=5 // pred_region
      %s666 = ssub.s32 %s9, 2
      // Predicated region
      $region41: #{inception_forward.2} parent=39 // pred_check
        %p667 = pneg %p130
      $region42: #{inception_forward.2} parent=39 // pred_check_branch
        %669 = sbr.rel (%p667) target = $region44
      $region43: #{inception_forward.2} parent=39 // pred_region
        %s670 = smul.u32 32, %s20
        %p671 = scmp.lt.s32.totalorder %s670, 63
        %s672 = scalar_select %p671, %s670, 63
        %p673 = scmp.lt.s32.totalorder %s21, 0
        %s674 = scalar_select %p673, %s21, 0
        %s675 = sadd.s32 %s674, %s672
        %s676 = smul.addr %s675, 8
        %s677 = scalar_lea.vmem %s3, %s676
      $region44: #{inception_forward.2} parent=39 // pred_fallthru
        _
    $region40: #{inception_forward.2} parent=5 // pred_fallthru
      _
  $region6: #{inception_forward.2} parent=0 // loop_footer
    %s13 = sadd.s32 1, %s9
  $region7: #{inception_forward.2} parent=0 // loop_footer_branch
    %8 = sbr.rel target = $region3
  $region8: #{inception_forward.2} parent=0 // loop_exit
    _

// kernel: inception_forward.3
$region0: #{inception_forward.3}
  #allocation0 [shape = 'u32[]', space=smem, size = 0x4, offset = 0x4, fixed_abs, tag = 'smem constant byte address 0x4 - core index']
  #allocation1 [shape = 'u32[144,128]{1,0:T(1,128)}', space=vmem, size = 0x12000, scoped, tag = 'internal scratch']
  %s0 = inlined_call_operand.vmem [shape: bf16[512,256], index: 0, kind: input, shape index: {}]
  %s1 = inlined_call_operand.vmem [shape: bf16[256,128], index: 1, kind: input, shape index: {}]
  %s2 = inlined_call_operand.vmem [shape: f32[1,128], index: 2, kind: input, shape index: {}]
  %s3 = inlined_call_operand.vmem [shape: f32[512,128], index: 3, kind: output, shape index: {}]
  %s4 = sld [smem:[#allocation0]]
  $region45: #{inception_forward.3} parent=0
    _
  %s6 = ssub.s32 1, %s4
  %s7 = scalar_select 0, %s6, %s4
  loop: start=0, step=1, limit=4
  $region2: #{inception_forward.3} parent=0 // loop_pre_header
    _
  $region3: #{inception_forward.3} parent=0 // loop_header
    %s9 = sphi 0, %s13
    %p10 = scmp.ge.s32.totalorder %s9, 4
    %s16 = sphi 0, %s28
    %s17 = sphi 0, %s24
    %s18 = sphi 0, %s16
    %s19 = sphi 0, %s17
    %s20 = sphi 0, %s18
    %s21 = sphi 0, %s19
    %s31 = sphi 0, %s33
    %s34 = sphi 0, %s31
    %s35 = sphi 0, %s34
    %s51 = sphi 0, %s35
    %s57 = sphi 0, %s59
    %s60 = sphi 0, %s57
    %s61 = sphi 0, %s60
    %s77 = sphi 0, %s61
    %s83 = sphi 0, %s85
    %s86 = sphi 0, %s83
    %s87 = sphi 0, %s86
    %s103 = sphi 0, %s87
    %s111 = sphi 0, %s113
    %s114 = sphi 0, %s111
    %s115 = sphi 0, %s114
    %s131 = sphi 0, %s115
  $region4: #{inception_forward.3} parent=0 // loop_header_branch
    %12 = sbr.rel (%p10) target = $region8
  $region5: #{inception_forward.3} parent=0 // loop_body
    %s14 = ssub.s32 %s9, 1
    %s15 = ssub.s32 %s9, 2
    %s22 = sadd.s32 1, %s17
    %p23 = scmp.ge.s32.totalorder %s22, 1
    %s24 = scalar_select %p23, 0, %s22
    %s25 = sadd.s32 1, %s16
    %s26 = scalar_select %p23, %s25, %s16
    %p27 = scmp.ge.s32.totalorder %s26, 2
    %s28 = scalar_select %p27, 0, %s26
    %s29 = ssub.s32 %s16, %s28
    %p30 = scmp.eq.s32.totalorder %s29, 0
    %s32 = sadd.s32 %s31, 1
    %s33 = scalar_select %p30, %s31, %s32
    %p36 = pneg %p30
    %p37 = scmp.eq.s32.totalorder %s9, 1
    %p38 = por %p36, %p37
    %p39 = scmp.ne.s32.totalorder %s31, %s34
    %p40 = scmp.eq.s32.totalorder %s9, 0
    %p41 = por %p39, %p40
    %p42 = scmp.ne.s32.totalorder %s31, %s34
    %p43 = scmp.eq.s32.totalorder %s14, 1
    %p44 = por %p42, %p43
    %p45 = scmp.ne.s32.totalorder %s34, %s35
    %p46 = scmp.eq.s32.totalorder %s14, 0
    %p47 = por %p45, %p46
    %p48 = scmp.ne.s32.totalorder %s34, %s35
    %p49 = scmp.eq.s32.totalorder %s15, 1
    %p50 = por %p48, %p49
    %p52 = scmp.ne.s32.totalorder %s35, %s51
    %p53 = scmp.eq.s32.totalorder %s15, 0
    %p54 = por %p52, %p53
    %s55 = ssub.s32 %s17, %s24
    %p56 = scmp.eq.s32.totalorder %s55, 0
    %s58 = sadd.s32 %s57, 1
    %s59 = scalar_select %p56, %s57, %s58
    %p62 = pneg %p56
    %p63 = scmp.eq.s32.totalorder %s9, 1
    %p64 = por %p62, %p63
    %p65 = scmp.ne.s32.totalorder %s57, %s60
    %p66 = scmp.eq.s32.totalorder %s9, 0
    %p67 = por %p65, %p66
    %p68 = scmp.ne.s32.totalorder %s57, %s60
    %p69 = scmp.eq.s32.totalorder %s14, 1
    %p70 = por %p68, %p69
    %p71 = scmp.ne.s32.totalorder %s60, %s61
    %p72 = scmp.eq.s32.totalorder %s14, 0
    %p73 = por %p71, %p72
    %p74 = scmp.ne.s32.totalorder %s60, %s61
    %p75 = scmp.eq.s32.totalorder %s15, 1
    %p76 = por %p74, %p75
    %p78 = scmp.ne.s32.totalorder %s61, %s77
    %p79 = scmp.eq.s32.totalorder %s15, 0
    %p80 = por %p78, %p79
    %s81 = ssub.s32 %s17, %s24
    %p82 = scmp.eq.s32.totalorder %s81, 0
    %s84 = sadd.s32 %s83, 1
    %s85 = scalar_select %p82, %s83, %s84
    %p88 = pneg %p82
    %p89 = scmp.eq.s32.totalorder %s9, 1
    %p90 = por %p88, %p89
    %p91 = scmp.ne.s32.totalorder %s83, %s86
    %p92 = scmp.eq.s32.totalorder %s9, 0
    %p93 = por %p91, %p92
    %p94 = scmp.ne.s32.totalorder %s83, %s86
    %p95 = scmp.eq.s32.totalorder %s14, 1
    %p96 = por %p94, %p95
    %p97 = scmp.ne.s32.totalorder %s86, %s87
    %p98 = scmp.eq.s32.totalorder %s14, 0
    %p99 = por %p97, %p98
    %p100 = scmp.ne.s32.totalorder %s86, %s87
    %p101 = scmp.eq.s32.totalorder %s15, 1
    %p102 = por %p100, %p101
    %p104 = scmp.ne.s32.totalorder %s87, %s103
    %p105 = scmp.eq.s32.totalorder %s15, 0
    %p106 = por %p104, %p105
    %s107 = ssub.s32 %s16, %s28
    %s108 = ssub.s32 %s17, %s24
    %s109 = sor.u32 %s107, %s108
    %p110 = scmp.eq.s32.totalorder %s109, 0
    %s112 = sadd.s32 %s111, 1
    %s113 = scalar_select %p110, %s111, %s112
    %p116 = pneg %p110
    %p117 = scmp.eq.s32.totalorder %s9, 1
    %p118 = por %p116, %p117
    %p119 = scmp.ne.s32.totalorder %s111, %s114
    %p120 = scmp.eq.s32.totalorder %s9, 0
    %p121 = por %p119, %p120
    %p122 = scmp.ne.s32.totalorder %s111, %s114
    %p123 = scmp.eq.s32.totalorder %s14, 1
    %p124 = por %p122, %p123
    %p125 = scmp.ne.s32.totalorder %s114, %s115
    %p126 = scmp.eq.s32.totalorder %s14, 0
    %p127 = por %p125, %p126
    %p128 = scmp.ne.s32.totalorder %s114, %s115
    %p129 = scmp.eq.s32.totalorder %s15, 1
    %p130 = por %p128, %p129
    %p132 = scmp.ne.s32.totalorder %s115, %s131
    %p133 = scmp.eq.s32.totalorder %s15, 0
    %p134 = por %p132, %p133
    %p135 = scmp.le.s32.totalorder 1, %s9
    %p136 = scmp.lt.s32.totalorder %s9, 3
    %p137 = pnand %p135, %p136
    %p138 = pneg %p137
    // Predicated region
    $region9: #{inception_forward.3} parent=5 // pred_check
      _
    $region10: #{inception_forward.3} parent=5 // pred_check_branch
      %140 = sbr.rel (%p137) target = $region12
    $region11: #{inception_forward.3} parent=5 // pred_region
      %s141 = ssub.s32 %s9, 1
      // Predicated region
      $region13: #{inception_forward.3} parent=11 // pred_check
        %p142 = pneg %p73
      $region14: #{inception_forward.3} parent=11 // pred_check_branch
        %144 = sbr.rel (%p142) target = $region16
      $region15: #{inception_forward.3} parent=11 // pred_region
        %p145 = scmp.lt.s32.totalorder %s19, 0
        %s146 = scalar_select %p145, %s19, 0
        %s147 = smul.addr %s146, 4
        %s148 = scalar_lea.vmem %s1, %s147
      $region16: #{inception_forward.3} parent=11 // pred_fallthru
        _
      // Predicated region
      $region17: #{inception_forward.3} parent=11 // pred_check
        %p149 = pneg %p99
      $region18: #{inception_forward.3} parent=11 // pred_check_branch
        %151 = sbr.rel (%p149) target = $region20
      $region19: #{inception_forward.3} parent=11 // pred_region
        %p152 = scmp.lt.s32.totalorder %s19, 0
        %s153 = scalar_select %p152, %s19, 0
        %s154 = scalar_lea.vmem %s2, %s153
      $region20: #{inception_forward.3} parent=11 // pred_fallthru
        _
    $region12: #{inception_forward.3} parent=5 // pred_fallthru
      _
    %p155 = scmp.lt.s32.totalorder %s9, 2
    // Predicated region
    $region21: #{inception_forward.3} parent=5 // pred_check
      %p156 = pneg %p155
    $region22: #{inception_forward.3} parent=5 // pred_check_branch
      %158 = sbr.rel (%p156) target = $region24
    $region23: #{inception_forward.3} parent=5 // pred_region
      // Predicated region
      $region25: #{inception_forward.3} parent=23 // pred_check
        %p159 = pneg %p41
      $region26: #{inception_forward.3} parent=23 // pred_check_branch
        %161 = sbr.rel (%p159) target = $region28
      $region27: #{inception_forward.3} parent=23 // pred_region
        %s162 = smul.u32 32, %s16
        %p163 = scmp.lt.s32.totalorder %s162, 63
        %s164 = scalar_select %p163, %s162, 63
        %s165 = smul.addr %s164, 2
        %s166 = smul.addr %s165, 4
        %s167 = scalar_lea.vmem %s0, %s166
        %s168 = smul.u32 32, %s16
      $region28: #{inception_forward.3} parent=23 // pred_fallthru
        _
    $region24: #{inception_forward.3} parent=5 // pred_fallthru
      _
    %p169 = scmp.le.s32.totalorder 1, %s9
    %p170 = scmp.lt.s32.totalorder %s9, 3
    %p171 = pnand %p169, %p170
    %p172 = pneg %p171
    // Predicated region
    $region29: #{inception_forward.3} parent=5 // pred_check
      _
    $region30: #{inception_forward.3} parent=5 // pred_check_branch
      %174 = sbr.rel (%p171) target = $region32
    $region31: #{inception_forward.3} parent=5 // pred_region
      %s175 = ssub.s32 %s9, 1
      %s176 = smul.u32 32, %s18
      %p177 = scmp.lt.s32.totalorder %s176, 63
      %s178 = scalar_select %p177, %s176, 63
      %s179 = smul.addr %s178, 2
      %s180 = smul.addr %s179, 4
      %s181 = scalar_lea.vmem %s0, %s180
      %p182 = pneg %p47
      %p183 = pneg %p44
      %p184 = scmp.lt.s32.totalorder %s19, 0
      %s185 = scalar_select %p184, %s19, 0
      %s186 = smul.addr %s185, 4
      %s187 = scalar_lea.vmem %s1, %s186
      %p188 = pneg %p73
      %p189 = pneg %p70
      %p190 = scmp.lt.s32.totalorder %s19, 0
      %s191 = scalar_select %p190, %s19, 0
      %s192 = scalar_lea.vmem %s2, %s191
      %p193 = pneg %p99
      %p194 = pneg %p96
      %p195 = pneg %p127
      %p196 = pneg %p124
      %s197 = smul.u32 32, %s18
      %p198 = scmp.lt.s32.totalorder %s197, 63
      %s199 = scalar_select %p198, %s197, 63
      %p200 = scmp.lt.s32.totalorder %s19, 0
      %s201 = scalar_select %p200, %s19, 0
      %s202 = sadd.s32 %s201, %s199
      %s203 = smul.addr %s202, 8
      %s204 = scalar_lea.vmem %s3, %s203
      %s205 = smul.u32 32, %s18
      %p206 = scmp.lt.s32.totalorder %s205, 63
      %s207 = scalar_select %p206, %s205, 63
      %s208 = smul.addr %s207, 2
      %s209 = smul.addr %s208, 4
      %s210 = scalar_lea.vmem %s0, %s209
      %s211 = smul.u32 32, %s18
      %p212 = scmp.lt.s32.totalorder %s19, 0
      %s213 = scalar_select %p212, %s19, 0
      %s214 = smul.addr %s213, 4
      %s215 = scalar_lea.vmem %s1, %s214
      %p216 = scmp.lt.s32.totalorder %s19, 0
      %s217 = scalar_select %p216, %s19, 0
      %s218 = scalar_lea.vmem %s2, %s217
      %s219 = smul.u32 32, %s18
      %p220 = scmp.lt.s32.totalorder %s219, 63
      %s221 = scalar_select %p220, %s219, 63
      %p222 = scmp.lt.s32.totalorder %s19, 0
      %s223 = scalar_select %p222, %s19, 0
      %s224 = sadd.s32 %s223, %s221
      %s225 = smul.addr %s224, 8
      %s226 = scalar_lea.vmem %s3, %s225
      %s227 = smul.u32 32, %s18
      %v229 = vld [vmem:[%s210] sm:$0xff]
      %v230 = vld [vmem:[%s210 + $0x8] sm:$0xff]
      %v231 = vld [vmem:[%s210 + $0x10] sm:$0xff]
      %v232 = vld [vmem:[%s210 + $0x18] sm:$0xff]
      %v233 = vld [vmem:[%s210 + $0x20] sm:$0xff]
      %v234 = vld [vmem:[%s210 + $0x28] sm:$0xff]
      %v235 = vld [vmem:[%s210 + $0x30] sm:$0xff]
      %v236 = vld [vmem:[%s210 + $0x38] sm:$0xff]
      %v237 = vld [vmem:[%s210 + $0x40] sm:$0xff]
      %v238 = vld [vmem:[%s210 + $0x48] sm:$0xff]
      %v239 = vld [vmem:[%s210 + $0x50] sm:$0xff]
      %v240 = vld [vmem:[%s210 + $0x58] sm:$0xff]
      %v241 = vld [vmem:[%s210 + $0x60] sm:$0xff]
      %v242 = vld [vmem:[%s210 + $0x68] sm:$0xff]
      %v243 = vld [vmem:[%s210 + $0x70] sm:$0xff]
      %v244 = vld [vmem:[%s210 + $0x78] sm:$0xff]
      %v245 = vld [vmem:[%s210 + $0x80] sm:$0xff]
      %v246 = vld [vmem:[%s210 + $0x88] sm:$0xff]
      %v247 = vld [vmem:[%s210 + $0x90] sm:$0xff]
      %v248 = vld [vmem:[%s210 + $0x98] sm:$0xff]
      %v249 = vld [vmem:[%s210 + $0xa0] sm:$0xff]
      %v250 = vld [vmem:[%s210 + $0xa8] sm:$0xff]
      %v251 = vld [vmem:[%s210 + $0xb0] sm:$0xff]
      %v252 = vld [vmem:[%s210 + $0xb8] sm:$0xff]
      %v253 = vld [vmem:[%s210 + $0xc0] sm:$0xff]
      %v254 = vld [vmem:[%s210 + $0xc8] sm:$0xff]
      %v255 = vld [vmem:[%s210 + $0xd0] sm:$0xff]
      %v256 = vld [vmem:[%s210 + $0xd8] sm:$0xff]
      %v257 = vld [vmem:[%s210 + $0xe0] sm:$0xff]
      %v258 = vld [vmem:[%s210 + $0xe8] sm:$0xff]
      %v259 = vld [vmem:[%s210 + $0xf0] sm:$0xff]
      %v260 = vld [vmem:[%s210 + $0xf8] sm:$0xff]
      %v261 = vld [vmem:[%s215] sm:$0xf]
      %v262 = vld [vmem:[%s215 + $0x4] sm:$0xf]
      %v263 = vld [vmem:[%s215 + $0x8] sm:$0xf]
      %v264 = vld [vmem:[%s215 + $0xc] sm:$0xf]
      %v265 = vld [vmem:[%s215 + $0x10] sm:$0xf]
      %v266 = vld [vmem:[%s215 + $0x14] sm:$0xf]
      %v267 = vld [vmem:[%s215 + $0x18] sm:$0xf]
      %v268 = vld [vmem:[%s215 + $0x1c] sm:$0xf]
      %v269 = vld [vmem:[%s215 + $0x20] sm:$0xf]
      %v270 = vld [vmem:[%s215 + $0x24] sm:$0xf]
      %v271 = vld [vmem:[%s215 + $0x28] sm:$0xf]
      %v272 = vld [vmem:[%s215 + $0x2c] sm:$0xf]
      %v273 = vld [vmem:[%s215 + $0x30] sm:$0xf]
      %v274 = vld [vmem:[%s215 + $0x34] sm:$0xf]
      %v275 = vld [vmem:[%s215 + $0x38] sm:$0xf]
      %v276 = vld [vmem:[%s215 + $0x3c] sm:$0xf]
      %v277 = vld [vmem:[%s215 + $0x40] sm:$0xf]
      %v278 = vld [vmem:[%s215 + $0x44] sm:$0xf]
      %v279 = vld [vmem:[%s215 + $0x48] sm:$0xf]
      %v280 = vld [vmem:[%s215 + $0x4c] sm:$0xf]
      %v281 = vld [vmem:[%s215 + $0x50] sm:$0xf]
      %v282 = vld [vmem:[%s215 + $0x54] sm:$0xf]
      %v283 = vld [vmem:[%s215 + $0x58] sm:$0xf]
      %v284 = vld [vmem:[%s215 + $0x5c] sm:$0xf]
      %v285 = vld [vmem:[%s215 + $0x60] sm:$0xf]
      %v286 = vld [vmem:[%s215 + $0x64] sm:$0xf]
      %v287 = vld [vmem:[%s215 + $0x68] sm:$0xf]
      %v288 = vld [vmem:[%s215 + $0x6c] sm:$0xf]
      %v289 = vld [vmem:[%s215 + $0x70] sm:$0xf]
      %v290 = vld [vmem:[%s215 + $0x74] sm:$0xf]
      %v291 = vld [vmem:[%s215 + $0x78] sm:$0xf]
      %v292 = vld [vmem:[%s215 + $0x7c] sm:$0xf]
      %v293 = vld [vmem:[%s218] sm:$0x1]
      %v295 = vlaneseq
      %v296 = vshrl.u32 %v295, 7
      %v297 = vsub.s32 0, %v296
      %v298 = vrot.slane %v293, %v297
      %v332 = vunpack.c.l.b16 %v229
      %v333 = vunpack.c.h.b16 %v229
      %v334 = vunpack.c.l.b16 %v230
      %v335 = vunpack.c.h.b16 %v230
      %v336 = vunpack.c.l.b16 %v231
      %v337 = vunpack.c.h.b16 %v231
      %v338 = vunpack.c.l.b16 %v232
      %v339 = vunpack.c.h.b16 %v232
      %v340 = vunpack.c.l.b16 %v233
      %v341 = vunpack.c.h.b16 %v233
      %v342 = vunpack.c.l.b16 %v234
      %v343 = vunpack.c.h.b16 %v234
      %v344 = vunpack.c.l.b16 %v235
      %v345 = vunpack.c.h.b16 %v235
      %v346 = vunpack.c.l.b16 %v236
      %v347 = vunpack.c.h.b16 %v236
      %v348 = vunpack.c.l.b16 %v237
      %v349 = vunpack.c.h.b16 %v237
      %v350 = vunpack.c.l.b16 %v238
      %v351 = vunpack.c.h.b16 %v238
      %v352 = vunpack.c.l.b16 %v239
      %v353 = vunpack.c.h.b16 %v239
      %v354 = vunpack.c.l.b16 %v240
      %v355 = vunpack.c.h.b16 %v240
      %v356 = vunpack.c.l.b16 %v241
      %v357 = vunpack.c.h.b16 %v241
      %v358 = vunpack.c.l.b16 %v242
      %v359 = vunpack.c.h.b16 %v242
      %v360 = vunpack.c.l.b16 %v243
      %v361 = vunpack.c.h.b16 %v243
      %v362 = vunpack.c.l.b16 %v244
      %v363 = vunpack.c.h.b16 %v244
      %v364 = vunpack.c.l.b16 %v245
      %v365 = vunpack.c.h.b16 %v245
      %v366 = vunpack.c.l.b16 %v246
      %v367 = vunpack.c.h.b16 %v246
      %v368 = vunpack.c.l.b16 %v247
      %v369 = vunpack.c.h.b16 %v247
      %v370 = vunpack.c.l.b16 %v248
      %v371 = vunpack.c.h.b16 %v248
      %v372 = vunpack.c.l.b16 %v249
      %v373 = vunpack.c.h.b16 %v249
      %v374 = vunpack.c.l.b16 %v250
      %v375 = vunpack.c.h.b16 %v250
      %v376 = vunpack.c.l.b16 %v251
      %v377 = vunpack.c.h.b16 %v251
      %v378 = vunpack.c.l.b16 %v252
      %v379 = vunpack.c.h.b16 %v252
      %v380 = vunpack.c.l.b16 %v253
      %v381 = vunpack.c.h.b16 %v253
      %v382 = vunpack.c.l.b16 %v254
      %v383 = vunpack.c.h.b16 %v254
      %v384 = vunpack.c.l.b16 %v255
      %v385 = vunpack.c.h.b16 %v255
      %v386 = vunpack.c.l.b16 %v256
      %v387 = vunpack.c.h.b16 %v256
      %v388 = vunpack.c.l.b16 %v257
      %v389 = vunpack.c.h.b16 %v257
      %v390 = vunpack.c.l.b16 %v258
      %v391 = vunpack.c.h.b16 %v258
      %v392 = vunpack.c.l.b16 %v259
      %v393 = vunpack.c.h.b16 %v259
      %v394 = vunpack.c.l.b16 %v260
      %v395 = vunpack.c.h.b16 %v260
      %v396 = vpack.c.b16 %v334, %v332
      %v397 = vpack.c.b16 %v335, %v333
      %v398 = vpack.c.b16 %v338, %v336
      %v399 = vpack.c.b16 %v339, %v337
      %v400 = vpack.c.b16 %v342, %v340
      %v401 = vpack.c.b16 %v343, %v341
      %v402 = vpack.c.b16 %v346, %v344
      %v403 = vpack.c.b16 %v347, %v345
      %v404 = vpack.c.b16 %v350, %v348
      %v405 = vpack.c.b16 %v351, %v349
      %v406 = vpack.c.b16 %v354, %v352
      %v407 = vpack.c.b16 %v355, %v353
      %v408 = vpack.c.b16 %v358, %v356
      %v409 = vpack.c.b16 %v359, %v357
      %v410 = vpack.c.b16 %v362, %v360
      %v411 = vpack.c.b16 %v363, %v361
      %v412 = vpack.c.b16 %v366, %v364
      %v413 = vpack.c.b16 %v367, %v365
      %v414 = vpack.c.b16 %v370, %v368
      %v415 = vpack.c.b16 %v371, %v369
      %v416 = vpack.c.b16 %v374, %v372
      %v417 = vpack.c.b16 %v375, %v373
      %v418 = vpack.c.b16 %v378, %v376
      %v419 = vpack.c.b16 %v379, %v377
      %v420 = vpack.c.b16 %v382, %v380
      %v421 = vpack.c.b16 %v383, %v381
      %v422 = vpack.c.b16 %v386, %v384
      %v423 = vpack.c.b16 %v387, %v385
      %v424 = vpack.c.b16 %v390, %v388
      %v425 = vpack.c.b16 %v391, %v389
      %v426 = vpack.c.b16 %v394, %v392
      %v427 = vpack.c.b16 %v395, %v393
      %v492 = vunpack.c.l.b16 %v261
      %v493 = vunpack.c.l.b16 %v262
      %v494 = vunpack.c.l.b16 %v263
      %v495 = vunpack.c.l.b16 %v264
      %v496 = vunpack.c.l.b16 %v265
      %v497 = vunpack.c.l.b16 %v266
      %v498 = vunpack.c.l.b16 %v267
      %v499 = vunpack.c.l.b16 %v268
      %v500 = vunpack.c.l.b16 %v269
      %v501 = vunpack.c.l.b16 %v270
      %v502 = vunpack.c.l.b16 %v271
      %v503 = vunpack.c.l.b16 %v272
      %v504 = vunpack.c.l.b16 %v273
      %v505 = vunpack.c.l.b16 %v274
      %v506 = vunpack.c.l.b16 %v275
      %v507 = vunpack.c.l.b16 %v276
      %v508 = vunpack.c.l.b16 %v277
      %v509 = vunpack.c.l.b16 %v278
      %v510 = vunpack.c.l.b16 %v279
      %v511 = vunpack.c.l.b16 %v280
      %v512 = vunpack.c.l.b16 %v281
      %v513 = vunpack.c.l.b16 %v282
      %v514 = vunpack.c.l.b16 %v283
      %v515 = vunpack.c.l.b16 %v284
      %v516 = vunpack.c.l.b16 %v285
      %v517 = vunpack.c.l.b16 %v286
      %v518 = vunpack.c.l.b16 %v287
      %v519 = vunpack.c.l.b16 %v288
      %v520 = vunpack.c.l.b16 %v289
      %v521 = vunpack.c.l.b16 %v290
      %v522 = vunpack.c.l.b16 %v291
      %v523 = vunpack.c.l.b16 %v292
      %v524 = vpack.c.b16 %v493, %v492
      %v525 = vpack.c.b16 %v495, %v494
      %v526 = vpack.c.b16 %v497, %v496
      %v527 = vpack.c.b16 %v499, %v498
      %v528 = vpack.c.b16 %v501, %v500
      %v529 = vpack.c.b16 %v503, %v502
      %v530 = vpack.c.b16 %v505, %v504
      %v531 = vpack.c.b16 %v507, %v506
      %v532 = vpack.c.b16 %v509, %v508
      %v533 = vpack.c.b16 %v511, %v510
      %v534 = vpack.c.b16 %v513, %v512
      %v535 = vpack.c.b16 %v515, %v514
      %v536 = vpack.c.b16 %v517, %v516
      %v537 = vpack.c.b16 %v519, %v518
      %v538 = vpack.c.b16 %v521, %v520
      %v539 = vpack.c.b16 %v523, %v522
      %556 = vmatprep.subr.bf16.mxu0 0
      %557 = vmatpush1.bf16.msra.mxu0 %v524
      %558 = vmatprep.subr.bf16.mxu0 0
      %559 = vmatpush1.bf16.msra.mxu0 %v525
      %560 = vmatprep.subr.bf16.mxu0 0
      %561 = vmatpush1.bf16.msra.mxu0 %v526
      %562 = vmatprep.subr.bf16.mxu0 0
      %563 = vmatpush1.bf16.msra.mxu0 %v527
      %564 = vmatprep.subr.bf16.mxu0 0
      %565 = vmatpush1.bf16.msra.mxu0 %v528
      %566 = vmatprep.subr.bf16.mxu0 0
      %567 = vmatpush1.bf16.msra.mxu0 %v529
      %568 = vmatprep.subr.bf16.mxu0 0
      %569 = vmatpush1.bf16.msra.mxu0 %v530
      %570 = vmatprep.subr.bf16.mxu0 0
      %571 = vmatpush1.bf16.msra.mxu0 %v531
      %572 = vmatprep.subr.bf16.mxu0 0
      %573 = vmatpush1.bf16.msra.mxu0 %v532
      %574 = vmatprep.subr.bf16.mxu0 0
      %575 = vmatpush1.bf16.msra.mxu0 %v533
      %576 = vmatprep.subr.bf16.mxu0 0
      %577 = vmatpush1.bf16.msra.mxu0 %v534
      %578 = vmatprep.subr.bf16.mxu0 0
      %579 = vmatpush1.bf16.msra.mxu0 %v535
      %580 = vmatprep.subr.bf16.mxu0 0
      %581 = vmatpush1.bf16.msra.mxu0 %v536
      %582 = vmatprep.subr.bf16.mxu0 0
      %583 = vmatpush1.bf16.msra.mxu0 %v537
      %584 = vmatprep.subr.bf16.mxu0 0
      %585 = vmatpush1.bf16.msra.mxu0 %v538
      %586 = vmatprep.subr.bf16.mxu0 0
      %587 = vmatpush1.bf16.msra.mxu0 %v539
      %588 = vmatprep.mubr.bf16.mxu0 %v397
      %589 = vmatmul.mubr.bf16.gmra.mrb[0].mxu0 %v396
      %v590 = vpop.f32.mrb[0].mxu0
      %v591 = vadd.f32 %v298, %v590
      %v592 = vpop.f32.mrb[0].mxu0
      %v593 = vpop.f32.mrb[0].mxu0
      %v594 = vadd.f32 %v298, %v593
      %v595 = vpop.f32.mrb[0].mxu0
      %596 = vmatprep.mubr.bf16.mxu0 %v399
      %597 = vmatmul.mubr.bf16.gmra.mrb[0].mxu0 %v398
      %v598 = vpop.f32.mrb[0].mxu0
      %v599 = vadd.f32 %v298, %v598
      %v600 = vpop.f32.mrb[0].mxu0
      %v601 = vpop.f32.mrb[0].mxu0
      %v602 = vadd.f32 %v298, %v601
      %v603 = vpop.f32.mrb[0].mxu0
      %604 = vmatprep.mubr.bf16.mxu0 %v401
      %605 = vmatmul.mubr.bf16.gmra.mrb[0].mxu0 %v400
      %v606 = vpop.f32.mrb[0].mxu0
      %v607 = vadd.f32 %v298, %v606
      %v608 = vpop.f32.mrb[0].mxu0
      %v609 = vpop.f32.mrb[0].mxu0
      %v610 = vadd.f32 %v298, %v609
      %v611 = vpop.f32.mrb[0].mxu0
      %612 = vmatprep.mubr.bf16.mxu0 %v403
      %613 = vmatmul.mubr.bf16.gmra.mrb[0].mxu0 %v402
      %v614 = vpop.f32.mrb[0].mxu0
      %v615 = vadd.f32 %v298, %v614
      %v616 = vpop.f32.mrb[0].mxu0
      %v617 = vpop.f32.mrb[0].mxu0
      %v618 = vadd.f32 %v298, %v617
      %v619 = vpop.f32.mrb[0].mxu0
      %620 = vmatprep.mubr.bf16.mxu0 %v405
      %621 = vmatmul.mubr.bf16.gmra.mrb[0].mxu0 %v404
      %v622 = vpop.f32.mrb[0].mxu0
      %v623 = vadd.f32 %v298, %v622
      %v624 = vpop.f32.mrb[0].mxu0
      %v625 = vpop.f32.mrb[0].mxu0
      %v626 = vadd.f32 %v298, %v625
      %v627 = vpop.f32.mrb[0].mxu0
      %628 = vmatprep.mubr.bf16.mxu0 %v407
      %629 = vmatmul.mubr.bf16.gmra.mrb[0].mxu0 %v406
      %v630 = vpop.f32.mrb[0].mxu0
      %v631 = vadd.f32 %v298, %v630
      %v632 = vpop.f32.mrb[0].mxu0
      %v633 = vpop.f32.mrb[0].mxu0
      %v634 = vadd.f32 %v298, %v633
      %v635 = vpop.f32.mrb[0].mxu0
      %636 = vmatprep.mubr.bf16.mxu0 %v409
      %637 = vmatmul.mubr.bf16.gmra.mrb[0].mxu0 %v408
      %v638 = vpop.f32.mrb[0].mxu0
      %v639 = vadd.f32 %v298, %v638
      %v640 = vpop.f32.mrb[0].mxu0
      %v641 = vpop.f32.mrb[0].mxu0
      %v642 = vadd.f32 %v298, %v641
      %v643 = vpop.f32.mrb[0].mxu0
      %644 = vmatprep.mubr.bf16.mxu0 %v411
      %645 = vmatmul.mubr.bf16.gmra.mrb[0].mxu0 %v410
      %v646 = vpop.f32.mrb[0].mxu0
      %v647 = vadd.f32 %v298, %v646
      %v648 = vpop.f32.mrb[0].mxu0
      %v649 = vpop.f32.mrb[0].mxu0
      %v650 = vadd.f32 %v298, %v649
      %v651 = vpop.f32.mrb[0].mxu0
      %652 = vmatprep.mubr.bf16.mxu0 %v413
      %653 = vmatmul.mubr.bf16.gmra.mrb[0].mxu0 %v412
      %v654 = vpop.f32.mrb[0].mxu0
      %v655 = vadd.f32 %v298, %v654
      %v656 = vpop.f32.mrb[0].mxu0
      %v657 = vpop.f32.mrb[0].mxu0
      %v658 = vadd.f32 %v298, %v657
      %v659 = vpop.f32.mrb[0].mxu0
      %660 = vmatprep.mubr.bf16.mxu0 %v415
      %661 = vmatmul.mubr.bf16.gmra.mrb[0].mxu0 %v414
      %v662 = vpop.f32.mrb[0].mxu0
      %v663 = vadd.f32 %v298, %v662
      %v664 = vpop.f32.mrb[0].mxu0
      %v665 = vpop.f32.mrb[0].mxu0
      %v666 = vadd.f32 %v298, %v665
      %v667 = vpop.f32.mrb[0].mxu0
      %668 = vmatprep.mubr.bf16.mxu0 %v417
      %669 = vmatmul.mubr.bf16.gmra.mrb[0].mxu0 %v416
      %v670 = vpop.f32.mrb[0].mxu0
      %v671 = vadd.f32 %v298, %v670
      %v672 = vpop.f32.mrb[0].mxu0
      %v673 = vpop.f32.mrb[0].mxu0
      %v674 = vadd.f32 %v298, %v673
      %v675 = vpop.f32.mrb[0].mxu0
      %676 = vmatprep.mubr.bf16.mxu0 %v419
      %677 = vmatmul.mubr.bf16.gmra.mrb[0].mxu0 %v418
      %v678 = vpop.f32.mrb[0].mxu0
      %v679 = vadd.f32 %v298, %v678
      %v680 = vpop.f32.mrb[0].mxu0
      %v681 = vpop.f32.mrb[0].mxu0
      %v682 = vadd.f32 %v298, %v681
      %v683 = vpop.f32.mrb[0].mxu0
      %684 = vmatprep.mubr.bf16.mxu0 %v421
      %685 = vmatmul.mubr.bf16.gmra.mrb[0].mxu0 %v420
      %v686 = vpop.f32.mrb[0].mxu0
      %v687 = vadd.f32 %v298, %v686
      %v688 = vpop.f32.mrb[0].mxu0
      %v689 = vpop.f32.mrb[0].mxu0
      %v690 = vadd.f32 %v298, %v689
      %v691 = vpop.f32.mrb[0].mxu0
      %692 = vmatprep.mubr.bf16.mxu0 %v423
      %693 = vmatmul.mubr.bf16.gmra.mrb[0].mxu0 %v422
      %v694 = vpop.f32.mrb[0].mxu0
      %v695 = vadd.f32 %v298, %v694
      %v696 = vpop.f32.mrb[0].mxu0
      %v697 = vpop.f32.mrb[0].mxu0
      %v698 = vadd.f32 %v298, %v697
      %v699 = vpop.f32.mrb[0].mxu0
      %700 = vmatprep.mubr.bf16.mxu0 %v425
      %701 = vmatmul.mubr.bf16.gmra.mrb[0].mxu0 %v424
      %v702 = vpop.f32.mrb[0].mxu0
      %v703 = vadd.f32 %v298, %v702
      %v704 = vpop.f32.mrb[0].mxu0
      %v705 = vpop.f32.mrb[0].mxu0
      %v706 = vadd.f32 %v298, %v705
      %v707 = vpop.f32.mrb[0].mxu0
      %708 = vmatprep.mubr.bf16.mxu0 %v427
      %709 = vmatmul.mubr.bf16.gmra.mrb[0].mxu0 %v426
      %v710 = vpop.f32.mrb[0].mxu0
      %v711 = vadd.f32 %v298, %v710
      %v712 = vpop.f32.mrb[0].mxu0
      %v713 = vpop.f32.mrb[0].mxu0
      %v714 = vadd.f32 %v298, %v713
      %v715 = vpop.f32.mrb[0].mxu0
      %716 = vdwg.mxu0
      %v717 = vmax.f32 %v591, 0.0
      %v718 = vmax.f32 %v594, 0.0
      %v719 = vmax.f32 %v599, 0.0
      %v720 = vmax.f32 %v602, 0.0
      %v721 = vmax.f32 %v607, 0.0
      %v722 = vmax.f32 %v610, 0.0
      %v723 = vmax.f32 %v615, 0.0
      %v724 = vmax.f32 %v618, 0.0
      %v725 = vmax.f32 %v623, 0.0
      %v726 = vmax.f32 %v626, 0.0
      %v727 = vmax.f32 %v631, 0.0
      %v728 = vmax.f32 %v634, 0.0
      %v729 = vmax.f32 %v639, 0.0
      %v730 = vmax.f32 %v642, 0.0
      %v731 = vmax.f32 %v647, 0.0
      %v732 = vmax.f32 %v650, 0.0
      %v733 = vmax.f32 %v655, 0.0
      %v734 = vmax.f32 %v658, 0.0
      %v735 = vmax.f32 %v663, 0.0
      %v736 = vmax.f32 %v666, 0.0
      %v737 = vmax.f32 %v671, 0.0
      %v738 = vmax.f32 %v674, 0.0
      %v739 = vmax.f32 %v679, 0.0
      %v740 = vmax.f32 %v682, 0.0
      %v741 = vmax.f32 %v687, 0.0
      %v742 = vmax.f32 %v690, 0.0
      %v743 = vmax.f32 %v695, 0.0
      %v744 = vmax.f32 %v698, 0.0
      %v745 = vmax.f32 %v703, 0.0
      %v746 = vmax.f32 %v706, 0.0
      %v747 = vmax.f32 %v711, 0.0
      %v748 = vmax.f32 %v714, 0.0
      %749 = vst [vmem:[%s226] sm:$0xff] %v717
      %750 = vst [vmem:[%s226 + $0x8] sm:$0xff] %v718
      %751 = vst [vmem:[%s226 + $0x10] sm:$0xff] %v719
      %752 = vst [vmem:[%s226 + $0x18] sm:$0xff] %v720
      %753 = vst [vmem:[%s226 + $0x20] sm:$0xff] %v721
      %754 = vst [vmem:[%s226 + $0x28] sm:$0xff] %v722
      %755 = vst [vmem:[%s226 + $0x30] sm:$0xff] %v723
      %756 = vst [vmem:[%s226 + $0x38] sm:$0xff] %v724
      %757 = vst [vmem:[%s226 + $0x40] sm:$0xff] %v725
      %758 = vst [vmem:[%s226 + $0x48] sm:$0xff] %v726
      %759 = vst [vmem:[%s226 + $0x50] sm:$0xff] %v727
      %760 = vst [vmem:[%s226 + $0x58] sm:$0xff] %v728
      %761 = vst [vmem:[%s226 + $0x60] sm:$0xff] %v729
      %762 = vst [vmem:[%s226 + $0x68] sm:$0xff] %v730
      %763 = vst [vmem:[%s226 + $0x70] sm:$0xff] %v731
      %764 = vst [vmem:[%s226 + $0x78] sm:$0xff] %v732
      %765 = vst [vmem:[%s226 + $0x80] sm:$0xff] %v733
      %766 = vst [vmem:[%s226 + $0x88] sm:$0xff] %v734
      %767 = vst [vmem:[%s226 + $0x90] sm:$0xff] %v735
      %768 = vst [vmem:[%s226 + $0x98] sm:$0xff] %v736
      %769 = vst [vmem:[%s226 + $0xa0] sm:$0xff] %v737
      %770 = vst [vmem:[%s226 + $0xa8] sm:$0xff] %v738
      %771 = vst [vmem:[%s226 + $0xb0] sm:$0xff] %v739
      %772 = vst [vmem:[%s226 + $0xb8] sm:$0xff] %v740
      %773 = vst [vmem:[%s226 + $0xc0] sm:$0xff] %v741
      %774 = vst [vmem:[%s226 + $0xc8] sm:$0xff] %v742
      %775 = vst [vmem:[%s226 + $0xd0] sm:$0xff] %v743
      %776 = vst [vmem:[%s226 + $0xd8] sm:$0xff] %v744
      %777 = vst [vmem:[%s226 + $0xe0] sm:$0xff] %v745
      %778 = vst [vmem:[%s226 + $0xe8] sm:$0xff] %v746
      %779 = vst [vmem:[%s226 + $0xf0] sm:$0xff] %v747
      %780 = vst [vmem:[%s226 + $0xf8] sm:$0xff] %v748
      %s781 = smul.u32 32, %s18
      %p782 = scmp.lt.s32.totalorder %s781, 63
      %s783 = scalar_select %p782, %s781, 63
      %p784 = scmp.lt.s32.totalorder %s19, 0
      %s785 = scalar_select %p784, %s19, 0
      %s786 = sadd.s32 %s785, %s783
      %s787 = smul.addr %s786, 8
      %s788 = scalar_lea.vmem %s3, %s787
      // Predicated region
      $region33: #{inception_forward.3} parent=31 // pred_check
        %p789 = pneg %p124
      $region34: #{inception_forward.3} parent=31 // pred_check_branch
        %791 = sbr.rel (%p789) target = $region36
      $region35: #{inception_forward.3} parent=31 // pred_region
        %s792 = smul.u32 32, %s18
      $region36: #{inception_forward.3} parent=31 // pred_fallthru
        _
    $region32: #{inception_forward.3} parent=5 // pred_fallthru
      _
    %p793 = scmp.le.s32.totalorder 2, %s9
    // Predicated region
    $region37: #{inception_forward.3} parent=5 // pred_check
      %p794 = pneg %p793
    $region38: #{inception_forward.3} parent=5 // pred_check_branch
      %796 = sbr.rel (%p794) target = $region40
    $region39: #{inception_forward.3} parent=5 // pred_region
      %s797 = ssub.s32 %s9, 2
      // Predicated region
      $region41: #{inception_forward.3} parent=39 // pred_check
        %p798 = pneg %p130
      $region42: #{inception_forward.3} parent=39 // pred_check_branch
        %800 = sbr.rel (%p798) target = $region44
      $region43: #{inception_forward.3} parent=39 // pred_region
        %s801 = smul.u32 32, %s20
        %p802 = scmp.lt.s32.totalorder %s801, 63
        %s803 = scalar_select %p802, %s801, 63
        %p804 = scmp.lt.s32.totalorder %s21, 0
        %s805 = scalar_select %p804, %s21, 0
        %s806 = sadd.s32 %s805, %s803
        %s807 = smul.addr %s806, 8
        %s808 = scalar_lea.vmem %s3, %s807
      $region44: #{inception_forward.3} parent=39 // pred_fallthru
        _
    $region40: #{inception_forward.3} parent=5 // pred_fallthru
      _
  $region6: #{inception_forward.3} parent=0 // loop_footer
    %s13 = sadd.s32 1, %s9
  $region7: #{inception_forward.3} parent=0 // loop_footer_branch
    %8 = sbr.rel target = $region3
  $region8: #{inception_forward.3} parent=0 // loop_exit
    _

</llo_original>
